<compile_context>
chip_gen: v7x
topology: tpu7x:2x2x1
jax: 0.10.0
libtpu: 0.0.40
codegen_flags: <defaults>
</compile_context>

<pallas_src>
import functools

import numpy as np
import jax
import jax.numpy as jnp
from jax import lax
from jax.experimental import pallas as pl
from jax.experimental.pallas import tpu as pltpu


# ----------------------------------------------------------------------------
# In-kernel helpers (operate on VMEM-resident values)
# ----------------------------------------------------------------------------
def _conv_causal_relu(a, w_flat, b_col, kernel_size, dilation):
    """Causal dilated conv1d + bias + ReLU on a (Cin, L) tile as ONE matmul.

    a:      (Cin, L)   activation tile (channels on sublanes, time on lanes)
    w_flat: (Cout, K*Cin)  weights with taps stacked on the contraction axis
    b_col:  (Cout, 1)
    """
    cin, L = a.shape
    pad = (kernel_size - 1) * dilation
    if pad > 0:
        ap = jnp.concatenate([jnp.zeros((cin, pad), a.dtype), a], axis=1)
    else:
        ap = a
    taps = [ap[:, k * dilation:k * dilation + L] for k in range(kernel_size)]
    stacked = taps[0] if kernel_size == 1 else jnp.concatenate(taps, axis=0)  # (K*Cin, L)
    y = jnp.dot(w_flat, stacked, preferred_element_type=jnp.float32) + b_col
    return jnp.maximum(y, 0.0)


def _fused_tcn_attn_fc_kernel(*refs, plan, kernel_size, out_dim):
    """Fused TCN -> attention -> FC for one batch element (grid=(B,))."""
    refs = list(refs)
    x_ref = refs.pop(0)
    o_ref = refs.pop(-1)
    a = x_ref[0]                                    # (Cin0, L), PyTorch NCL per batch

    # --- TCN temporal blocks, all intermediates stay in VMEM ------------------
    for blk in plan:
        d = blk["dilation"]
        w1 = refs.pop(0); b1 = refs.pop(0)
        w2 = refs.pop(0); b2 = refs.pop(0)
        h = _conv_causal_relu(a, w1[...], b1[...], kernel_size, d)
        h = _conv_causal_relu(h, w2[...], b2[...], kernel_size, d)
        if blk["downsample"]:
            wds = refs.pop(0); bds = refs.pop(0)
            res = jnp.dot(wds[...], a, preferred_element_type=jnp.float32) + bds[...]
        else:
            res = a
        a = jnp.maximum(h + res, 0.0)               # (C, L)

    wfc = refs.pop(0)                               # (L, C*out_dim)
    bfc = refs.pop(0)                               # (1, out_dim)

    # --- dot-product self-attention on (C, L) (PyTorch layout) ----------------
    C, L = a.shape
    scale = 1.0 / float(np.sqrt(L))                 # value.size(-1) == L
    scores = lax.dot_general(a, a, (((1,), (1,)), ((), ())),
                             preferred_element_type=jnp.float32) * scale      # (C, C)
    scores = scores - jnp.max(scores, axis=-1, keepdims=True)
    e = jnp.exp(scores)
    attn = e * pl.reciprocal(jnp.sum(e, axis=-1, keepdims=True), approx=True)
    ctx = jnp.dot(attn, a, preferred_element_type=jnp.float32)                # (C, L)

    # --- flatten + Linear as ONE matmul ---------------------------------------
    # out[o] = sum_{c,l} ctx[c,l] * Wfc[c*L + l, o]
    #        = sum_c M[c, c*out_dim + o]   with M = ctx @ Wfc_relayout(L, C*out)
    m = jnp.dot(ctx, wfc[...], preferred_element_type=jnp.float32)            # (C, C*out)
    acc = bfc[...]                                                            # (1, out)
    for c in range(C):
        acc = acc + m[c:c + 1, c * out_dim:(c + 1) * out_dim]
    o_ref[0] = acc


# ----------------------------------------------------------------------------
# Wrapper: lays out weights for the fused kernel and issues one pallas_call
# ----------------------------------------------------------------------------
def tcn_attention_forward(x_ncl, params, kernel_size):
    """x_ncl: (B, input_dim, L) -- same layout as the PyTorch module's input."""
    B, cin0, L = x_ncl.shape
    out_dim = int(params["b_fc"].shape[0])
    K = kernel_size

    args = [x_ncl]
    in_specs = [pl.BlockSpec((1, cin0, L), lambda b: (b, 0, 0))]

    def _add_weight(arr):                    # weights are VMEM-resident, same block for all b
        args.append(arr)
        in_specs.append(pl.BlockSpec(arr.shape, lambda b: (0, 0)))

    plan = []
    for i, blk in enumerate(params["blocks"]):
        d = 2 ** i                                           # TCN dilation schedule
        cout, cin, _ = blk["w1"].shape
        # conv weights: (Cout, Cin, K) -> (Cout, K*Cin) so all taps are one contraction
        _add_weight(blk["w1"].transpose(0, 2, 1).reshape(cout, K * cin))
        _add_weight(blk["b1"].reshape(cout, 1))
        _add_weight(blk["w2"].transpose(0, 2, 1).reshape(cout, K * cout))
        _add_weight(blk["b2"].reshape(cout, 1))
        has_ds = "wds" in blk
        if has_ds:
            _add_weight(blk["wds"])                          # (Cout, Cin)
            _add_weight(blk["bds"].reshape(cout, 1))
        plan.append({"dilation": d, "downsample": has_ds})

    c_last = params["blocks"][-1]["w2"].shape[0] if params["blocks"] else cin0
    # PyTorch flatten is row-major over (C, L); re-lay the FC weight as (L, C*out)
    # so the flattened matmul is a single (C,L)@(L,C*out) contraction.
    wfc2 = params["w_fc"].reshape(c_last, L, out_dim).transpose(1, 0, 2)
    _add_weight(wfc2.reshape(L, c_last * out_dim))
    _add_weight(params["b_fc"].reshape(1, out_dim))

    kernel = functools.partial(_fused_tcn_attn_fc_kernel, plan=tuple(plan),
                               kernel_size=K, out_dim=out_dim)
    out = pl.pallas_call(
        kernel,
        out_shape=jax.ShapeDtypeStruct((B, 1, out_dim), jnp.float32),
        grid=(B,),
        in_specs=in_specs,
        out_specs=pl.BlockSpec((1, 1, out_dim), lambda b: (b, 0, 0)),
        compiler_params=pltpu.CompilerParams(
            dimension_semantics=("parallel",)),              # v7x: split B across 2 TCs
    )(*args)
    return out[:, 0, :]


# ----------------------------------------------------------------------------
# Parameter init (deterministic, mirrors the PyTorch module's shapes)
# ----------------------------------------------------------------------------
def init_params(key, input_dim, seq_len, output_dim, num_channels, kernel_size):
    keys = iter(jax.random.split(key, 8 * len(num_channels) + 4))
    blocks = []
    in_c = input_dim
    for out_c in num_channels:
        blk = {
            # PyTorch conv1d layout (Cout, Cin, K)
            "w1": 0.01 * jax.random.normal(next(keys), (out_c, in_c, kernel_size), jnp.float32),
            "b1": jax.random.uniform(next(keys), (out_c,), jnp.float32, -1.0, 1.0)
                  / np.sqrt(in_c * kernel_size),
            "w2": 0.01 * jax.random.normal(next(keys), (out_c, out_c, kernel_size), jnp.float32),
            "b2": jax.random.uniform(next(keys), (out_c,), jnp.float32, -1.0, 1.0)
                  / np.sqrt(out_c * kernel_size),
        }
        if in_c != out_c:  # 1x1 downsample conv, stored as (Cout, Cin)
            blk["wds"] = 0.01 * jax.random.normal(next(keys), (out_c, in_c), jnp.float32)
            blk["bds"] = jax.random.uniform(next(keys), (out_c,), jnp.float32, -1.0, 1.0) / np.sqrt(in_c)
        blocks.append(blk)
        in_c = out_c
    hidden = in_c * seq_len
    w_fc = jax.random.uniform(next(keys), (hidden, output_dim), jnp.float32, -1.0, 1.0) / np.sqrt(hidden)
    b_fc = jax.random.uniform(next(keys), (output_dim,), jnp.float32, -1.0, 1.0) / np.sqrt(hidden)
    return {"blocks": blocks, "w_fc": w_fc, "b_fc": b_fc}


# ----------------------------------------------------------------------------
# Pure-JAX reference (independent: lax.conv_general_dilated), for validation
# ----------------------------------------------------------------------------
def ref_forward(x_ncl, params, kernel_size):
    x = x_ncl
    for i, blk in enumerate(params["blocks"]):
        d = 2 ** i
        pad = (kernel_size - 1) * d

        def conv(inp, w_oik, b):
            y = lax.conv_general_dilated(
                inp, w_oik, window_strides=(1,), padding=[(pad, pad)],
                rhs_dilation=(d,), dimension_numbers=("NCH", "OIH", "NCH"),
                precision=lax.Precision.HIGHEST)
            return y + b[None, :, None]

        out = jax.nn.relu(conv(x, blk["w1"], blk["b1"])[:, :, :-pad])   # chomp
        out = jax.nn.relu(conv(out, blk["w2"], blk["b2"])[:, :, :-pad])
        if "wds" in blk:
            res = jnp.einsum("oi,nil->nol", blk["wds"], x,
                             precision=lax.Precision.HIGHEST) + blk["bds"][None, :, None]
        else:
            res = x
        x = jax.nn.relu(out + res)

    B, C, L = x.shape
    scores = jnp.matmul(x, jnp.transpose(x, (0, 2, 1)),
                        precision=lax.Precision.HIGHEST) / jnp.sqrt(jnp.float32(L))
    attn = jax.nn.softmax(scores, axis=-1)
    ctx = jnp.matmul(attn, x, precision=lax.Precision.HIGHEST)
    flat = ctx.reshape(B, -1)
    return jnp.matmul(flat, params["w_fc"], precision=lax.Precision.HIGHEST) + params["b_fc"]


if __name__ == "__main__":
    # Small config consistent with the module:
    #   x: (batch=2, input_dim=4, seq_len=16), num_channels=(8, 8),
    #   kernel_size=2, dropout=0.0, hidden_dim = 8*16 = 128, output_dim=4.
    B, input_dim, L = 2, 4, 16
    num_channels = (8, 8)
    kernel_size = 2
    output_dim = 4

    x = jax.random.normal(jax.random.PRNGKey(0), (B, input_dim, L), jnp.float32)
    params = init_params(jax.random.PRNGKey(1), input_dim, L, output_dim,
                         num_channels, kernel_size)

    fwd = jax.jit(functools.partial(tcn_attention_forward, kernel_size=kernel_size))
    out = jax.block_until_ready(fwd(x, params))

    ref = jax.block_until_ready(ref_forward(x, params, kernel_size))
    np.testing.assert_allclose(np.asarray(out), np.asarray(ref), atol=5e-3, rtol=5e-3)

    print("KERNEL_OK")
</pallas_src>

<mosaic_0001>
module attributes {stable_mosaic.version = 11 : i64} {
  func.func @_fused_tcn_attn_fc_kernel(%arg0: i32, %arg1: memref<1x4x16xf32, #tpu.memory_space<vmem>>, %arg2: memref<8x8xf32, #tpu.memory_space<vmem>>, %arg3: memref<8x1xf32, #tpu.memory_space<vmem>>, %arg4: memref<8x16xf32, #tpu.memory_space<vmem>>, %arg5: memref<8x1xf32, #tpu.memory_space<vmem>>, %arg6: memref<8x4xf32, #tpu.memory_space<vmem>>, %arg7: memref<8x1xf32, #tpu.memory_space<vmem>>, %arg8: memref<8x16xf32, #tpu.memory_space<vmem>>, %arg9: memref<8x1xf32, #tpu.memory_space<vmem>>, %arg10: memref<8x16xf32, #tpu.memory_space<vmem>>, %arg11: memref<8x1xf32, #tpu.memory_space<vmem>>, %arg12: memref<16x32xf32, #tpu.memory_space<vmem>>, %arg13: memref<1x4xf32, #tpu.memory_space<vmem>>, %arg14: memref<1x1x4xf32, #tpu.memory_space<vmem>>) attributes {dimension_semantics = [#tpu.dimension_semantics<parallel>], iteration_bounds = array<i64: 2>, scalar_prefetch = 0 : i64, scratch_operands = 0 : i64, tpu.core_type = #tpu.core_type<tc>, window_params = [{transform_indices = @transform_0, window_bounds = array<i64: 1, 4, 16>}, {pipeline_mode = #tpu.pipeline_mode<synchronous>, transform_indices = @transform_1, window_bounds = array<i64: 8, 8>}, {pipeline_mode = #tpu.pipeline_mode<synchronous>, transform_indices = @transform_2, window_bounds = array<i64: 8, 1>}, {pipeline_mode = #tpu.pipeline_mode<synchronous>, transform_indices = @transform_3, window_bounds = array<i64: 8, 16>}, {pipeline_mode = #tpu.pipeline_mode<synchronous>, transform_indices = @transform_4, window_bounds = array<i64: 8, 1>}, {pipeline_mode = #tpu.pipeline_mode<synchronous>, transform_indices = @transform_5, window_bounds = array<i64: 8, 4>}, {pipeline_mode = #tpu.pipeline_mode<synchronous>, transform_indices = @transform_6, window_bounds = array<i64: 8, 1>}, {pipeline_mode = #tpu.pipeline_mode<synchronous>, transform_indices = @transform_7, window_bounds = array<i64: 8, 16>}, {pipeline_mode = #tpu.pipeline_mode<synchronous>, transform_indices = @transform_8, window_bounds = array<i64: 8, 1>}, {pipeline_mode = #tpu.pipeline_mode<synchronous>, transform_indices = @transform_9, window_bounds = array<i64: 8, 16>}, {pipeline_mode = #tpu.pipeline_mode<synchronous>, transform_indices = @transform_10, window_bounds = array<i64: 8, 1>}, {pipeline_mode = #tpu.pipeline_mode<synchronous>, transform_indices = @transform_11, window_bounds = array<i64: 16, 32>}, {pipeline_mode = #tpu.pipeline_mode<synchronous>, transform_indices = @transform_12, window_bounds = array<i64: 1, 4>}, {transform_indices = @transform_13, window_bounds = array<i64: 1, 1, 4>}]} {
    %c0 = arith.constant 0 : index
    %c0_0 = arith.constant 0 : index
    %c0_1 = arith.constant 0 : index
    %0 = vector.load %arg1[%c0, %c0_0, %c0_1] : memref<1x4x16xf32, #tpu.memory_space<vmem>>, vector<1x4x16xf32>
    %1 = vector.shape_cast %0 : vector<1x4x16xf32> to vector<4x16xf32>
    %c0_2 = arith.constant 0 : index
    %c0_3 = arith.constant 0 : index
    %2 = vector.load %arg2[%c0_2, %c0_3] : memref<8x8xf32, #tpu.memory_space<vmem>>, vector<8x8xf32>
    %c0_4 = arith.constant 0 : index
    %c0_5 = arith.constant 0 : index
    %3 = vector.load %arg3[%c0_4, %c0_5] : memref<8x1xf32, #tpu.memory_space<vmem>>, vector<8x1xf32>
    %cst = arith.constant 0.000000e+00 : f32
    %4 = vector.broadcast %cst : f32 to vector<4x1xf32>
    %5 = tpu.concatenate %4, %1 in 1 : vector<4x1xf32>, vector<4x16xf32> -> vector<4x17xf32>
    %6 = vector.extract_strided_slice %5 {offsets = [0, 0], sizes = [4, 16], strides = [1, 1]} : vector<4x17xf32> to vector<4x16xf32>
    %7 = vector.extract_strided_slice %5 {offsets = [0, 1], sizes = [4, 16], strides = [1, 1]} : vector<4x17xf32> to vector<4x16xf32>
    %8 = tpu.concatenate %6, %7 in 0 : vector<4x16xf32>, vector<4x16xf32> -> vector<8x16xf32>
    %cst_6 = arith.constant dense<0.000000e+00> : vector<8x16xf32>
    %9 = tpu.matmul %2, %8, %cst_6 {dimension_numbers = #tpu.dot_dimension_numbers<[1], [0], [0], [1], [0, 0, 1, 1], [], []>} : vector<8x8xf32>, vector<8x16xf32>, vector<8x16xf32> -> vector<8x16xf32>
    %10 = vector.broadcast %3 : vector<8x1xf32> to vector<8x16xf32>
    %11 = arith.addf %9, %10 : vector<8x16xf32>
    %cst_7 = arith.constant 0.000000e+00 : f32
    %12 = vector.broadcast %cst_7 : f32 to vector<8x16xf32>
    %13 = arith.maximumf %11, %12 : vector<8x16xf32>
    %c0_8 = arith.constant 0 : index
    %c0_9 = arith.constant 0 : index
    %14 = vector.load %arg4[%c0_8, %c0_9] : memref<8x16xf32, #tpu.memory_space<vmem>>, vector<8x16xf32>
    %c0_10 = arith.constant 0 : index
    %c0_11 = arith.constant 0 : index
    %15 = vector.load %arg5[%c0_10, %c0_11] : memref<8x1xf32, #tpu.memory_space<vmem>>, vector<8x1xf32>
    %cst_12 = arith.constant 0.000000e+00 : f32
    %16 = vector.broadcast %cst_12 : f32 to vector<8x1xf32>
    %17 = tpu.concatenate %16, %13 in 1 : vector<8x1xf32>, vector<8x16xf32> -> vector<8x17xf32>
    %18 = vector.extract_strided_slice %17 {offsets = [0, 0], sizes = [8, 16], strides = [1, 1]} : vector<8x17xf32> to vector<8x16xf32>
    %19 = vector.extract_strided_slice %17 {offsets = [0, 1], sizes = [8, 16], strides = [1, 1]} : vector<8x17xf32> to vector<8x16xf32>
    %20 = tpu.concatenate %18, %19 in 0 : vector<8x16xf32>, vector<8x16xf32> -> vector<16x16xf32>
    %cst_13 = arith.constant dense<0.000000e+00> : vector<8x16xf32>
    %21 = tpu.matmul %14, %20, %cst_13 {dimension_numbers = #tpu.dot_dimension_numbers<[1], [0], [0], [1], [0, 0, 1, 1], [], []>} : vector<8x16xf32>, vector<16x16xf32>, vector<8x16xf32> -> vector<8x16xf32>
    %22 = vector.broadcast %15 : vector<8x1xf32> to vector<8x16xf32>
    %23 = arith.addf %21, %22 : vector<8x16xf32>
    %cst_14 = arith.constant 0.000000e+00 : f32
    %24 = vector.broadcast %cst_14 : f32 to vector<8x16xf32>
    %25 = arith.maximumf %23, %24 : vector<8x16xf32>
    %c0_15 = arith.constant 0 : index
    %c0_16 = arith.constant 0 : index
    %26 = vector.load %arg6[%c0_15, %c0_16] : memref<8x4xf32, #tpu.memory_space<vmem>>, vector<8x4xf32>
    %cst_17 = arith.constant dense<0.000000e+00> : vector<8x16xf32>
    %27 = tpu.matmul %26, %1, %cst_17 {dimension_numbers = #tpu.dot_dimension_numbers<[1], [0], [0], [1], [0, 0, 1, 1], [], []>} : vector<8x4xf32>, vector<4x16xf32>, vector<8x16xf32> -> vector<8x16xf32>
    %c0_18 = arith.constant 0 : index
    %c0_19 = arith.constant 0 : index
    %28 = vector.load %arg7[%c0_18, %c0_19] : memref<8x1xf32, #tpu.memory_space<vmem>>, vector<8x1xf32>
    %29 = vector.broadcast %28 : vector<8x1xf32> to vector<8x16xf32>
    %30 = arith.addf %27, %29 : vector<8x16xf32>
    %31 = arith.addf %25, %30 : vector<8x16xf32>
    %cst_20 = arith.constant 0.000000e+00 : f32
    %32 = vector.broadcast %cst_20 : f32 to vector<8x16xf32>
    %33 = arith.maximumf %31, %32 : vector<8x16xf32>
    %c0_21 = arith.constant 0 : index
    %c0_22 = arith.constant 0 : index
    %34 = vector.load %arg8[%c0_21, %c0_22] : memref<8x16xf32, #tpu.memory_space<vmem>>, vector<8x16xf32>
    %c0_23 = arith.constant 0 : index
    %c0_24 = arith.constant 0 : index
    %35 = vector.load %arg9[%c0_23, %c0_24] : memref<8x1xf32, #tpu.memory_space<vmem>>, vector<8x1xf32>
    %cst_25 = arith.constant 0.000000e+00 : f32
    %36 = vector.broadcast %cst_25 : f32 to vector<8x2xf32>
    %37 = tpu.concatenate %36, %33 in 1 : vector<8x2xf32>, vector<8x16xf32> -> vector<8x18xf32>
    %38 = vector.extract_strided_slice %37 {offsets = [0, 0], sizes = [8, 16], strides = [1, 1]} : vector<8x18xf32> to vector<8x16xf32>
    %39 = vector.extract_strided_slice %37 {offsets = [0, 2], sizes = [8, 16], strides = [1, 1]} : vector<8x18xf32> to vector<8x16xf32>
    %40 = tpu.concatenate %38, %39 in 0 : vector<8x16xf32>, vector<8x16xf32> -> vector<16x16xf32>
    %cst_26 = arith.constant dense<0.000000e+00> : vector<8x16xf32>
    %41 = tpu.matmul %34, %40, %cst_26 {dimension_numbers = #tpu.dot_dimension_numbers<[1], [0], [0], [1], [0, 0, 1, 1], [], []>} : vector<8x16xf32>, vector<16x16xf32>, vector<8x16xf32> -> vector<8x16xf32>
    %42 = vector.broadcast %35 : vector<8x1xf32> to vector<8x16xf32>
    %43 = arith.addf %41, %42 : vector<8x16xf32>
    %cst_27 = arith.constant 0.000000e+00 : f32
    %44 = vector.broadcast %cst_27 : f32 to vector<8x16xf32>
    %45 = arith.maximumf %43, %44 : vector<8x16xf32>
    %c0_28 = arith.constant 0 : index
    %c0_29 = arith.constant 0 : index
    %46 = vector.load %arg10[%c0_28, %c0_29] : memref<8x16xf32, #tpu.memory_space<vmem>>, vector<8x16xf32>
    %c0_30 = arith.constant 0 : index
    %c0_31 = arith.constant 0 : index
    %47 = vector.load %arg11[%c0_30, %c0_31] : memref<8x1xf32, #tpu.memory_space<vmem>>, vector<8x1xf32>
    %cst_32 = arith.constant 0.000000e+00 : f32
    %48 = vector.broadcast %cst_32 : f32 to vector<8x2xf32>
    %49 = tpu.concatenate %48, %45 in 1 : vector<8x2xf32>, vector<8x16xf32> -> vector<8x18xf32>
    %50 = vector.extract_strided_slice %49 {offsets = [0, 0], sizes = [8, 16], strides = [1, 1]} : vector<8x18xf32> to vector<8x16xf32>
    %51 = vector.extract_strided_slice %49 {offsets = [0, 2], sizes = [8, 16], strides = [1, 1]} : vector<8x18xf32> to vector<8x16xf32>
    %52 = tpu.concatenate %50, %51 in 0 : vector<8x16xf32>, vector<8x16xf32> -> vector<16x16xf32>
    %cst_33 = arith.constant dense<0.000000e+00> : vector<8x16xf32>
    %53 = tpu.matmul %46, %52, %cst_33 {dimension_numbers = #tpu.dot_dimension_numbers<[1], [0], [0], [1], [0, 0, 1, 1], [], []>} : vector<8x16xf32>, vector<16x16xf32>, vector<8x16xf32> -> vector<8x16xf32>
    %54 = vector.broadcast %47 : vector<8x1xf32> to vector<8x16xf32>
    %55 = arith.addf %53, %54 : vector<8x16xf32>
    %cst_34 = arith.constant 0.000000e+00 : f32
    %56 = vector.broadcast %cst_34 : f32 to vector<8x16xf32>
    %57 = arith.maximumf %55, %56 : vector<8x16xf32>
    %58 = arith.addf %57, %33 : vector<8x16xf32>
    %cst_35 = arith.constant 0.000000e+00 : f32
    %59 = vector.broadcast %cst_35 : f32 to vector<8x16xf32>
    %60 = arith.maximumf %58, %59 : vector<8x16xf32>
    %cst_36 = arith.constant dense<0.000000e+00> : vector<8x8xf32>
    %61 = tpu.matmul %60, %60, %cst_36 {dimension_numbers = #tpu.dot_dimension_numbers<[1], [1], [0], [0], [0, 0, 1, 0], [], []>} : vector<8x16xf32>, vector<8x16xf32>, vector<8x8xf32> -> vector<8x8xf32>
    %cst_37 = arith.constant 2.500000e-01 : f32
    %62 = vector.broadcast %cst_37 : f32 to vector<8x8xf32>
    %63 = arith.mulf %61, %62 : vector<8x8xf32>
    %cst_38 = arith.constant dense<0xFF800000> : vector<8xf32>
    %64 = vector.multi_reduction <maximumf>, %63, %cst_38 [1] : vector<8x8xf32> to vector<8xf32>
    %65 = vector.shape_cast %64 : vector<8xf32> to vector<8x1xf32>
    %66 = vector.broadcast %65 : vector<8x1xf32> to vector<8x8xf32>
    %67 = arith.subf %63, %66 : vector<8x8xf32>
    %68 = math.exp %67 : vector<8x8xf32>
    %cst_39 = arith.constant dense<0.000000e+00> : vector<8xf32>
    %69 = vector.multi_reduction <add>, %68, %cst_39 [1] : vector<8x8xf32> to vector<8xf32>
    %70 = vector.shape_cast %69 : vector<8xf32> to vector<8x1xf32>
    %71 = tpu.reciprocal %70 {approx = true} : vector<8x1xf32> -> vector<8x1xf32>
    %72 = vector.broadcast %71 : vector<8x1xf32> to vector<8x8xf32>
    %73 = arith.mulf %68, %72 : vector<8x8xf32>
    %cst_40 = arith.constant dense<0.000000e+00> : vector<8x16xf32>
    %74 = tpu.matmul %73, %60, %cst_40 {dimension_numbers = #tpu.dot_dimension_numbers<[1], [0], [0], [1], [0, 0, 1, 1], [], []>} : vector<8x8xf32>, vector<8x16xf32>, vector<8x16xf32> -> vector<8x16xf32>
    %c0_41 = arith.constant 0 : index
    %c0_42 = arith.constant 0 : index
    %75 = vector.load %arg12[%c0_41, %c0_42] : memref<16x32xf32, #tpu.memory_space<vmem>>, vector<16x32xf32>
    %cst_43 = arith.constant dense<0.000000e+00> : vector<8x32xf32>
    %76 = tpu.matmul %74, %75, %cst_43 {dimension_numbers = #tpu.dot_dimension_numbers<[1], [0], [0], [1], [0, 0, 1, 1], [], []>} : vector<8x16xf32>, vector<16x32xf32>, vector<8x32xf32> -> vector<8x32xf32>
    %c0_44 = arith.constant 0 : index
    %c0_45 = arith.constant 0 : index
    %77 = vector.load %arg13[%c0_44, %c0_45] : memref<1x4xf32, #tpu.memory_space<vmem>>, vector<1x4xf32>
    %78 = vector.extract_strided_slice %76 {offsets = [0, 0], sizes = [1, 4], strides = [1, 1]} : vector<8x32xf32> to vector<1x4xf32>
    %79 = arith.addf %77, %78 : vector<1x4xf32>
    %80 = vector.extract_strided_slice %76 {offsets = [1, 4], sizes = [1, 4], strides = [1, 1]} : vector<8x32xf32> to vector<1x4xf32>
    %81 = arith.addf %79, %80 : vector<1x4xf32>
    %82 = vector.extract_strided_slice %76 {offsets = [2, 8], sizes = [1, 4], strides = [1, 1]} : vector<8x32xf32> to vector<1x4xf32>
    %83 = arith.addf %81, %82 : vector<1x4xf32>
    %84 = vector.extract_strided_slice %76 {offsets = [3, 12], sizes = [1, 4], strides = [1, 1]} : vector<8x32xf32> to vector<1x4xf32>
    %85 = arith.addf %83, %84 : vector<1x4xf32>
    %86 = vector.extract_strided_slice %76 {offsets = [4, 16], sizes = [1, 4], strides = [1, 1]} : vector<8x32xf32> to vector<1x4xf32>
    %87 = arith.addf %85, %86 : vector<1x4xf32>
    %88 = vector.extract_strided_slice %76 {offsets = [5, 20], sizes = [1, 4], strides = [1, 1]} : vector<8x32xf32> to vector<1x4xf32>
    %89 = arith.addf %87, %88 : vector<1x4xf32>
    %90 = vector.extract_strided_slice %76 {offsets = [6, 24], sizes = [1, 4], strides = [1, 1]} : vector<8x32xf32> to vector<1x4xf32>
    %91 = arith.addf %89, %90 : vector<1x4xf32>
    %92 = vector.extract_strided_slice %76 {offsets = [7, 28], sizes = [1, 4], strides = [1, 1]} : vector<8x32xf32> to vector<1x4xf32>
    %93 = arith.addf %91, %92 : vector<1x4xf32>
    %c0_46 = arith.constant 0 : index
    %c0_47 = arith.constant 0 : index
    %c0_48 = arith.constant 0 : index
    %94 = vector.load %arg14[%c0_46, %c0_47, %c0_48] : memref<1x1x4xf32, #tpu.memory_space<vmem>>, vector<1x1x4xf32>
    %95 = vector.shape_cast %94 : vector<1x1x4xf32> to vector<1x4xf32>
    %96 = vector.shape_cast %93 : vector<1x4xf32> to vector<1x1x4xf32>
    tpu.vector_store %arg14[%c0_46, %c0_47, %c0_48], %96 {strides = array<i32>} : memref<1x1x4xf32, #tpu.memory_space<vmem>>, vector<1x1x4xf32>,
    return
  }
  func.func @transform_0(%arg0: i32) -> (i32, i32, i32) {
    %c0_i32 = arith.constant 0 : i32
    %c0_i32_0 = arith.constant 0 : i32
    %c0_i32_1 = arith.constant 0 : i32
    return %arg0, %c0_i32, %c0_i32_0 : i32, i32, i32
  }
  func.func @transform_1(%arg0: i32) -> (i32, i32) {
    %c0_i32 = arith.constant 0 : i32
    %c0_i32_0 = arith.constant 0 : i32
    %c0_i32_1 = arith.constant 0 : i32
    return %c0_i32, %c0_i32_0 : i32, i32
  }
  func.func @transform_2(%arg0: i32) -> (i32, i32) {
    %c0_i32 = arith.constant 0 : i32
    %c0_i32_0 = arith.constant 0 : i32
    %c0_i32_1 = arith.constant 0 : i32
    return %c0_i32, %c0_i32_0 : i32, i32
  }
  func.func @transform_3(%arg0: i32) -> (i32, i32) {
    %c0_i32 = arith.constant 0 : i32
    %c0_i32_0 = arith.constant 0 : i32
    %c0_i32_1 = arith.constant 0 : i32
    return %c0_i32, %c0_i32_0 : i32, i32
  }
  func.func @transform_4(%arg0: i32) -> (i32, i32) {
    %c0_i32 = arith.constant 0 : i32
    %c0_i32_0 = arith.constant 0 : i32
    %c0_i32_1 = arith.constant 0 : i32
    return %c0_i32, %c0_i32_0 : i32, i32
  }
  func.func @transform_5(%arg0: i32) -> (i32, i32) {
    %c0_i32 = arith.constant 0 : i32
    %c0_i32_0 = arith.constant 0 : i32
    %c0_i32_1 = arith.constant 0 : i32
    return %c0_i32, %c0_i32_0 : i32, i32
  }
  func.func @transform_6(%arg0: i32) -> (i32, i32) {
    %c0_i32 = arith.constant 0 : i32
    %c0_i32_0 = arith.constant 0 : i32
    %c0_i32_1 = arith.constant 0 : i32
    return %c0_i32, %c0_i32_0 : i32, i32
  }
  func.func @transform_7(%arg0: i32) -> (i32, i32) {
    %c0_i32 = arith.constant 0 : i32
    %c0_i32_0 = arith.constant 0 : i32
    %c0_i32_1 = arith.constant 0 : i32
    return %c0_i32, %c0_i32_0 : i32, i32
  }
  func.func @transform_8(%arg0: i32) -> (i32, i32) {
    %c0_i32 = arith.constant 0 : i32
    %c0_i32_0 = arith.constant 0 : i32
    %c0_i32_1 = arith.constant 0 : i32
    return %c0_i32, %c0_i32_0 : i32, i32
  }
  func.func @transform_9(%arg0: i32) -> (i32, i32) {
    %c0_i32 = arith.constant 0 : i32
    %c0_i32_0 = arith.constant 0 : i32
    %c0_i32_1 = arith.constant 0 : i32
    return %c0_i32, %c0_i32_0 : i32, i32
  }
  func.func @transform_10(%arg0: i32) -> (i32, i32) {
    %c0_i32 = arith.constant 0 : i32
    %c0_i32_0 = arith.constant 0 : i32
    %c0_i32_1 = arith.constant 0 : i32
    return %c0_i32, %c0_i32_0 : i32, i32
  }
  func.func @transform_11(%arg0: i32) -> (i32, i32) {
    %c0_i32 = arith.constant 0 : i32
    %c0_i32_0 = arith.constant 0 : i32
    %c0_i32_1 = arith.constant 0 : i32
    return %c0_i32, %c0_i32_0 : i32, i32
  }
  func.func @transform_12(%arg0: i32) -> (i32, i32) {
    %c0_i32 = arith.constant 0 : i32
    %c0_i32_0 = arith.constant 0 : i32
    %c0_i32_1 = arith.constant 0 : i32
    return %c0_i32, %c0_i32_0 : i32, i32
  }
  func.func @transform_13(%arg0: i32) -> (i32, i32, i32) {
    %c0_i32 = arith.constant 0 : i32
    %c0_i32_0 = arith.constant 0 : i32
    %c0_i32_1 = arith.constant 0 : i32
    return %arg0, %c0_i32, %c0_i32_0 : i32, i32, i32
  }
}

</mosaic_0001>

<llo_original>
// kernel: tcn_attention_forward.1
$region0: #{tcn_attention_forward.1}
  #allocation0 [shape = 'u32[]', space=smem, size = 0x4, offset = 0x4, fixed_abs, tag = 'smem constant byte address 0x4 - core index']
  #allocation1 [shape = 'u32[144,128]{1,0:T(1,128)}', space=vmem, size = 0x12000, scoped, tag = 'internal scratch']
  %s0 = inlined_call_operand.vmem [shape: f32[2,4,16], index: 0, kind: input, shape index: {}]
  %s1 = inlined_call_operand.vmem [shape: f32[8,8], index: 1, kind: input, shape index: {}]
  %s2 = inlined_call_operand.vmem [shape: f32[8,1], index: 2, kind: input, shape index: {}]
  %s3 = inlined_call_operand.vmem [shape: f32[8,16], index: 3, kind: input, shape index: {}]
  %s4 = inlined_call_operand.vmem [shape: f32[8,1], index: 4, kind: input, shape index: {}]
  %s5 = inlined_call_operand.vmem [shape: f32[8,4], index: 5, kind: input, shape index: {}]
  %s6 = inlined_call_operand.vmem [shape: f32[8,1], index: 6, kind: input, shape index: {}]
  %s7 = inlined_call_operand.vmem [shape: f32[8,16], index: 7, kind: input, shape index: {}]
  %s8 = inlined_call_operand.vmem [shape: f32[8,1], index: 8, kind: input, shape index: {}]
  %s9 = inlined_call_operand.vmem [shape: f32[8,16], index: 9, kind: input, shape index: {}]
  %s10 = inlined_call_operand.vmem [shape: f32[8,1], index: 10, kind: input, shape index: {}]
  %s11 = inlined_call_operand.vmem [shape: f32[16,32], index: 11, kind: input, shape index: {}]
  %s12 = inlined_call_operand.vmem [shape: f32[1,4], index: 12, kind: input, shape index: {}]
  %s13 = inlined_call_operand.hbm [shape: f32[2,1,4], index: 13, kind: output, shape index: {}]
  %s14 = sld [smem:[#allocation0]]
  $region85: #{tcn_attention_forward.1} parent=0
    _
  %s16 = ssub.s32 1, %s14
  %s17 = scalar_select 0, %s16, %s14
  $region1: #{tcn_attention_forward.1} parent=0
    #allocation2 [shape = 'u8[1024]{0}', space=vmem, size = 0x400, scoped, tag = 'output window, operand 0']
    #allocation3 [shape = 's32[2]{0}', space=sflag, size = 0x8, scoped, tag = 'scoped memory for tcn_attention_forward.1']
    %18 = vsyncpa [#allocation3], 0
    %s19 = scalar_lea.sflag [#allocation3], 1
    %20 = vsyncpa %s19, 0
    loop: start=0, step=1, limit=4
    $region2: #{tcn_attention_forward.1} parent=1 // loop_pre_header
      _
    $region3: #{tcn_attention_forward.1} parent=1 // loop_header
      %s22 = sphi 0, %s26
      %p23 = scmp.ge.s32.totalorder %s22, 4
      %s32 = sphi 0, %s34
      %s35 = sphi 0, %s32
      %s36 = sphi 0, %s35
      %s52 = sphi 0, %s36
      %s56 = sphi 0, %s56
      %s58 = sphi 0, %s56
      %s59 = sphi 0, %s58
      %s73 = sphi 0, %s59
      %s77 = sphi 0, %s77
      %s79 = sphi 0, %s77
      %s80 = sphi 0, %s79
      %s94 = sphi 0, %s80
      %s98 = sphi 0, %s98
      %s100 = sphi 0, %s98
      %s101 = sphi 0, %s100
      %s115 = sphi 0, %s101
      %s119 = sphi 0, %s119
      %s121 = sphi 0, %s119
      %s122 = sphi 0, %s121
      %s136 = sphi 0, %s122
      %s140 = sphi 0, %s140
      %s142 = sphi 0, %s140
      %s143 = sphi 0, %s142
      %s157 = sphi 0, %s143
      %s161 = sphi 0, %s161
      %s163 = sphi 0, %s161
      %s164 = sphi 0, %s163
      %s178 = sphi 0, %s164
      %s182 = sphi 0, %s182
      %s184 = sphi 0, %s182
      %s185 = sphi 0, %s184
      %s199 = sphi 0, %s185
      %s203 = sphi 0, %s203
      %s205 = sphi 0, %s203
      %s206 = sphi 0, %s205
      %s220 = sphi 0, %s206
      %s224 = sphi 0, %s224
      %s226 = sphi 0, %s224
      %s227 = sphi 0, %s226
      %s241 = sphi 0, %s227
      %s245 = sphi 0, %s245
      %s247 = sphi 0, %s245
      %s248 = sphi 0, %s247
      %s262 = sphi 0, %s248
      %s266 = sphi 0, %s266
      %s268 = sphi 0, %s266
      %s269 = sphi 0, %s268
      %s283 = sphi 0, %s269
      %s287 = sphi 0, %s287
      %s289 = sphi 0, %s287
      %s290 = sphi 0, %s289
      %s304 = sphi 0, %s290
      %s310 = sphi 0, %s312
      %s313 = sphi 0, %s310
      %s314 = sphi 0, %s313
      %s330 = sphi 0, %s314
    $region4: #{tcn_attention_forward.1} parent=1 // loop_header_branch
      %25 = sbr.rel (%p23) target = $region8
    $region5: #{tcn_attention_forward.1} parent=1 // loop_body
      %s27 = ssub.s32 %s22, 1
      %s28 = ssub.s32 %s22, 2
      %s29 = sadd.s32 %s22, 1
      %s30 = ssub.s32 %s22, %s29
      %p31 = scmp.eq.s32.totalorder %s30, 0
      %s33 = sadd.s32 %s32, 1
      %s34 = scalar_select %p31, %s32, %s33
      %p37 = pneg %p31
      %p38 = scmp.eq.s32.totalorder %s22, 1
      %p39 = por %p37, %p38
      %p40 = scmp.ne.s32.totalorder %s32, %s35
      %p41 = scmp.eq.s32.totalorder %s22, 0
      %p42 = por %p40, %p41
      %p43 = scmp.ne.s32.totalorder %s32, %s35
      %p44 = scmp.eq.s32.totalorder %s27, 1
      %p45 = por %p43, %p44
      %p46 = scmp.ne.s32.totalorder %s35, %s36
      %p47 = scmp.eq.s32.totalorder %s27, 0
      %p48 = por %p46, %p47
      %p49 = scmp.ne.s32.totalorder %s35, %s36
      %p50 = scmp.eq.s32.totalorder %s28, 1
      %p51 = por %p49, %p50
      %p53 = scmp.ne.s32.totalorder %s36, %s52
      %p54 = scmp.eq.s32.totalorder %s28, 0
      %p55 = por %p53, %p54
      %s57 = sadd.s32 %s56, 1
      %p60 = scmp.eq.s32.totalorder %s22, 1
      %p61 = scmp.ne.s32.totalorder %s56, %s58
      %p62 = scmp.eq.s32.totalorder %s22, 0
      %p63 = por %p61, %p62
      %p64 = scmp.ne.s32.totalorder %s56, %s58
      %p65 = scmp.eq.s32.totalorder %s27, 1
      %p66 = por %p64, %p65
      %p67 = scmp.ne.s32.totalorder %s58, %s59
      %p68 = scmp.eq.s32.totalorder %s27, 0
      %p69 = por %p67, %p68
      %p70 = scmp.ne.s32.totalorder %s58, %s59
      %p71 = scmp.eq.s32.totalorder %s28, 1
      %p72 = por %p70, %p71
      %p74 = scmp.ne.s32.totalorder %s59, %s73
      %p75 = scmp.eq.s32.totalorder %s28, 0
      %p76 = por %p74, %p75
      %s78 = sadd.s32 %s77, 1
      %p81 = scmp.eq.s32.totalorder %s22, 1
      %p82 = scmp.ne.s32.totalorder %s77, %s79
      %p83 = scmp.eq.s32.totalorder %s22, 0
      %p84 = por %p82, %p83
      %p85 = scmp.ne.s32.totalorder %s77, %s79
      %p86 = scmp.eq.s32.totalorder %s27, 1
      %p87 = por %p85, %p86
      %p88 = scmp.ne.s32.totalorder %s79, %s80
      %p89 = scmp.eq.s32.totalorder %s27, 0
      %p90 = por %p88, %p89
      %p91 = scmp.ne.s32.totalorder %s79, %s80
      %p92 = scmp.eq.s32.totalorder %s28, 1
      %p93 = por %p91, %p92
      %p95 = scmp.ne.s32.totalorder %s80, %s94
      %p96 = scmp.eq.s32.totalorder %s28, 0
      %p97 = por %p95, %p96
      %s99 = sadd.s32 %s98, 1
      %p102 = scmp.eq.s32.totalorder %s22, 1
      %p103 = scmp.ne.s32.totalorder %s98, %s100
      %p104 = scmp.eq.s32.totalorder %s22, 0
      %p105 = por %p103, %p104
      %p106 = scmp.ne.s32.totalorder %s98, %s100
      %p107 = scmp.eq.s32.totalorder %s27, 1
      %p108 = por %p106, %p107
      %p109 = scmp.ne.s32.totalorder %s100, %s101
      %p110 = scmp.eq.s32.totalorder %s27, 0
      %p111 = por %p109, %p110
      %p112 = scmp.ne.s32.totalorder %s100, %s101
      %p113 = scmp.eq.s32.totalorder %s28, 1
      %p114 = por %p112, %p113
      %p116 = scmp.ne.s32.totalorder %s101, %s115
      %p117 = scmp.eq.s32.totalorder %s28, 0
      %p118 = por %p116, %p117
      %s120 = sadd.s32 %s119, 1
      %p123 = scmp.eq.s32.totalorder %s22, 1
      %p124 = scmp.ne.s32.totalorder %s119, %s121
      %p125 = scmp.eq.s32.totalorder %s22, 0
      %p126 = por %p124, %p125
      %p127 = scmp.ne.s32.totalorder %s119, %s121
      %p128 = scmp.eq.s32.totalorder %s27, 1
      %p129 = por %p127, %p128
      %p130 = scmp.ne.s32.totalorder %s121, %s122
      %p131 = scmp.eq.s32.totalorder %s27, 0
      %p132 = por %p130, %p131
      %p133 = scmp.ne.s32.totalorder %s121, %s122
      %p134 = scmp.eq.s32.totalorder %s28, 1
      %p135 = por %p133, %p134
      %p137 = scmp.ne.s32.totalorder %s122, %s136
      %p138 = scmp.eq.s32.totalorder %s28, 0
      %p139 = por %p137, %p138
      %s141 = sadd.s32 %s140, 1
      %p144 = scmp.eq.s32.totalorder %s22, 1
      %p145 = scmp.ne.s32.totalorder %s140, %s142
      %p146 = scmp.eq.s32.totalorder %s22, 0
      %p147 = por %p145, %p146
      %p148 = scmp.ne.s32.totalorder %s140, %s142
      %p149 = scmp.eq.s32.totalorder %s27, 1
      %p150 = por %p148, %p149
      %p151 = scmp.ne.s32.totalorder %s142, %s143
      %p152 = scmp.eq.s32.totalorder %s27, 0
      %p153 = por %p151, %p152
      %p154 = scmp.ne.s32.totalorder %s142, %s143
      %p155 = scmp.eq.s32.totalorder %s28, 1
      %p156 = por %p154, %p155
      %p158 = scmp.ne.s32.totalorder %s143, %s157
      %p159 = scmp.eq.s32.totalorder %s28, 0
      %p160 = por %p158, %p159
      %s162 = sadd.s32 %s161, 1
      %p165 = scmp.eq.s32.totalorder %s22, 1
      %p166 = scmp.ne.s32.totalorder %s161, %s163
      %p167 = scmp.eq.s32.totalorder %s22, 0
      %p168 = por %p166, %p167
      %p169 = scmp.ne.s32.totalorder %s161, %s163
      %p170 = scmp.eq.s32.totalorder %s27, 1
      %p171 = por %p169, %p170
      %p172 = scmp.ne.s32.totalorder %s163, %s164
      %p173 = scmp.eq.s32.totalorder %s27, 0
      %p174 = por %p172, %p173
      %p175 = scmp.ne.s32.totalorder %s163, %s164
      %p176 = scmp.eq.s32.totalorder %s28, 1
      %p177 = por %p175, %p176
      %p179 = scmp.ne.s32.totalorder %s164, %s178
      %p180 = scmp.eq.s32.totalorder %s28, 0
      %p181 = por %p179, %p180
      %s183 = sadd.s32 %s182, 1
      %p186 = scmp.eq.s32.totalorder %s22, 1
      %p187 = scmp.ne.s32.totalorder %s182, %s184
      %p188 = scmp.eq.s32.totalorder %s22, 0
      %p189 = por %p187, %p188
      %p190 = scmp.ne.s32.totalorder %s182, %s184
      %p191 = scmp.eq.s32.totalorder %s27, 1
      %p192 = por %p190, %p191
      %p193 = scmp.ne.s32.totalorder %s184, %s185
      %p194 = scmp.eq.s32.totalorder %s27, 0
      %p195 = por %p193, %p194
      %p196 = scmp.ne.s32.totalorder %s184, %s185
      %p197 = scmp.eq.s32.totalorder %s28, 1
      %p198 = por %p196, %p197
      %p200 = scmp.ne.s32.totalorder %s185, %s199
      %p201 = scmp.eq.s32.totalorder %s28, 0
      %p202 = por %p200, %p201
      %s204 = sadd.s32 %s203, 1
      %p207 = scmp.eq.s32.totalorder %s22, 1
      %p208 = scmp.ne.s32.totalorder %s203, %s205
      %p209 = scmp.eq.s32.totalorder %s22, 0
      %p210 = por %p208, %p209
      %p211 = scmp.ne.s32.totalorder %s203, %s205
      %p212 = scmp.eq.s32.totalorder %s27, 1
      %p213 = por %p211, %p212
      %p214 = scmp.ne.s32.totalorder %s205, %s206
      %p215 = scmp.eq.s32.totalorder %s27, 0
      %p216 = por %p214, %p215
      %p217 = scmp.ne.s32.totalorder %s205, %s206
      %p218 = scmp.eq.s32.totalorder %s28, 1
      %p219 = por %p217, %p218
      %p221 = scmp.ne.s32.totalorder %s206, %s220
      %p222 = scmp.eq.s32.totalorder %s28, 0
      %p223 = por %p221, %p222
      %s225 = sadd.s32 %s224, 1
      %p228 = scmp.eq.s32.totalorder %s22, 1
      %p229 = scmp.ne.s32.totalorder %s224, %s226
      %p230 = scmp.eq.s32.totalorder %s22, 0
      %p231 = por %p229, %p230
      %p232 = scmp.ne.s32.totalorder %s224, %s226
      %p233 = scmp.eq.s32.totalorder %s27, 1
      %p234 = por %p232, %p233
      %p235 = scmp.ne.s32.totalorder %s226, %s227
      %p236 = scmp.eq.s32.totalorder %s27, 0
      %p237 = por %p235, %p236
      %p238 = scmp.ne.s32.totalorder %s226, %s227
      %p239 = scmp.eq.s32.totalorder %s28, 1
      %p240 = por %p238, %p239
      %p242 = scmp.ne.s32.totalorder %s227, %s241
      %p243 = scmp.eq.s32.totalorder %s28, 0
      %p244 = por %p242, %p243
      %s246 = sadd.s32 %s245, 1
      %p249 = scmp.eq.s32.totalorder %s22, 1
      %p250 = scmp.ne.s32.totalorder %s245, %s247
      %p251 = scmp.eq.s32.totalorder %s22, 0
      %p252 = por %p250, %p251
      %p253 = scmp.ne.s32.totalorder %s245, %s247
      %p254 = scmp.eq.s32.totalorder %s27, 1
      %p255 = por %p253, %p254
      %p256 = scmp.ne.s32.totalorder %s247, %s248
      %p257 = scmp.eq.s32.totalorder %s27, 0
      %p258 = por %p256, %p257
      %p259 = scmp.ne.s32.totalorder %s247, %s248
      %p260 = scmp.eq.s32.totalorder %s28, 1
      %p261 = por %p259, %p260
      %p263 = scmp.ne.s32.totalorder %s248, %s262
      %p264 = scmp.eq.s32.totalorder %s28, 0
      %p265 = por %p263, %p264
      %s267 = sadd.s32 %s266, 1
      %p270 = scmp.eq.s32.totalorder %s22, 1
      %p271 = scmp.ne.s32.totalorder %s266, %s268
      %p272 = scmp.eq.s32.totalorder %s22, 0
      %p273 = por %p271, %p272
      %p274 = scmp.ne.s32.totalorder %s266, %s268
      %p275 = scmp.eq.s32.totalorder %s27, 1
      %p276 = por %p274, %p275
      %p277 = scmp.ne.s32.totalorder %s268, %s269
      %p278 = scmp.eq.s32.totalorder %s27, 0
      %p279 = por %p277, %p278
      %p280 = scmp.ne.s32.totalorder %s268, %s269
      %p281 = scmp.eq.s32.totalorder %s28, 1
      %p282 = por %p280, %p281
      %p284 = scmp.ne.s32.totalorder %s269, %s283
      %p285 = scmp.eq.s32.totalorder %s28, 0
      %p286 = por %p284, %p285
      %s288 = sadd.s32 %s287, 1
      %p291 = scmp.eq.s32.totalorder %s22, 1
      %p292 = scmp.ne.s32.totalorder %s287, %s289
      %p293 = scmp.eq.s32.totalorder %s22, 0
      %p294 = por %p292, %p293
      %p295 = scmp.ne.s32.totalorder %s287, %s289
      %p296 = scmp.eq.s32.totalorder %s27, 1
      %p297 = por %p295, %p296
      %p298 = scmp.ne.s32.totalorder %s289, %s290
      %p299 = scmp.eq.s32.totalorder %s27, 0
      %p300 = por %p298, %p299
      %p301 = scmp.ne.s32.totalorder %s289, %s290
      %p302 = scmp.eq.s32.totalorder %s28, 1
      %p303 = por %p301, %p302
      %p305 = scmp.ne.s32.totalorder %s290, %s304
      %p306 = scmp.eq.s32.totalorder %s28, 0
      %p307 = por %p305, %p306
      %s308 = ssub.s32 %s22, %s29
      %p309 = scmp.eq.s32.totalorder %s308, 0
      %s311 = sadd.s32 %s310, 1
      %s312 = scalar_select %p309, %s310, %s311
      %p315 = pneg %p309
      %p316 = scmp.eq.s32.totalorder %s22, 1
      %p317 = por %p315, %p316
      %p318 = scmp.ne.s32.totalorder %s310, %s313
      %p319 = scmp.eq.s32.totalorder %s22, 0
      %p320 = por %p318, %p319
      %p321 = scmp.ne.s32.totalorder %s310, %s313
      %p322 = scmp.eq.s32.totalorder %s27, 1
      %p323 = por %p321, %p322
      %p324 = scmp.ne.s32.totalorder %s313, %s314
      %p325 = scmp.eq.s32.totalorder %s27, 0
      %p326 = por %p324, %p325
      %p327 = scmp.ne.s32.totalorder %s313, %s314
      %p328 = scmp.eq.s32.totalorder %s28, 1
      %p329 = por %p327, %p328
      %p331 = scmp.ne.s32.totalorder %s314, %s330
      %p332 = scmp.eq.s32.totalorder %s28, 0
      %p333 = por %p331, %p332
      %p334 = scmp.le.s32.totalorder 1, %s22
      %p335 = scmp.lt.s32.totalorder %s22, 3
      %p336 = pnand %p334, %p335
      %p337 = pneg %p336
      // Predicated region
      $region9: #{tcn_attention_forward.1} parent=5 // pred_check
        _
      $region10: #{tcn_attention_forward.1} parent=5 // pred_check_branch
        %339 = sbr.rel (%p336) target = $region12
      $region11: #{tcn_attention_forward.1} parent=5 // pred_region
        %s340 = ssub.s32 %s22, 1
        // Predicated region
        $region13: #{tcn_attention_forward.1} parent=11 // pred_check
          %p341 = pneg %p69
        $region14: #{tcn_attention_forward.1} parent=11 // pred_check_branch
          %343 = sbr.rel (%p341) target = $region16
        $region15: #{tcn_attention_forward.1} parent=11 // pred_region
          _
        $region16: #{tcn_attention_forward.1} parent=11 // pred_fallthru
          _
        // Predicated region
        $region17: #{tcn_attention_forward.1} parent=11 // pred_check
          %p344 = pneg %p90
        $region18: #{tcn_attention_forward.1} parent=11 // pred_check_branch
          %346 = sbr.rel (%p344) target = $region20
        $region19: #{tcn_attention_forward.1} parent=11 // pred_region
          _
        $region20: #{tcn_attention_forward.1} parent=11 // pred_fallthru
          _
        // Predicated region
        $region21: #{tcn_attention_forward.1} parent=11 // pred_check
          %p347 = pneg %p111
        $region22: #{tcn_attention_forward.1} parent=11 // pred_check_branch
          %349 = sbr.rel (%p347) target = $region24
        $region23: #{tcn_attention_forward.1} parent=11 // pred_region
          _
        $region24: #{tcn_attention_forward.1} parent=11 // pred_fallthru
          _
        // Predicated region
        $region25: #{tcn_attention_forward.1} parent=11 // pred_check
          %p350 = pneg %p132
        $region26: #{tcn_attention_forward.1} parent=11 // pred_check_branch
          %352 = sbr.rel (%p350) target = $region28
        $region27: #{tcn_attention_forward.1} parent=11 // pred_region
          _
        $region28: #{tcn_attention_forward.1} parent=11 // pred_fallthru
          _
        // Predicated region
        $region29: #{tcn_attention_forward.1} parent=11 // pred_check
          %p353 = pneg %p153
        $region30: #{tcn_attention_forward.1} parent=11 // pred_check_branch
          %355 = sbr.rel (%p353) target = $region32
        $region31: #{tcn_attention_forward.1} parent=11 // pred_region
          _
        $region32: #{tcn_attention_forward.1} parent=11 // pred_fallthru
          _
        // Predicated region
        $region33: #{tcn_attention_forward.1} parent=11 // pred_check
          %p356 = pneg %p174
        $region34: #{tcn_attention_forward.1} parent=11 // pred_check_branch
          %358 = sbr.rel (%p356) target = $region36
        $region35: #{tcn_attention_forward.1} parent=11 // pred_region
          _
        $region36: #{tcn_attention_forward.1} parent=11 // pred_fallthru
          _
        // Predicated region
        $region37: #{tcn_attention_forward.1} parent=11 // pred_check
          %p359 = pneg %p195
        $region38: #{tcn_attention_forward.1} parent=11 // pred_check_branch
          %361 = sbr.rel (%p359) target = $region40
        $region39: #{tcn_attention_forward.1} parent=11 // pred_region
          _
        $region40: #{tcn_attention_forward.1} parent=11 // pred_fallthru
          _
        // Predicated region
        $region41: #{tcn_attention_forward.1} parent=11 // pred_check
          %p362 = pneg %p216
        $region42: #{tcn_attention_forward.1} parent=11 // pred_check_branch
          %364 = sbr.rel (%p362) target = $region44
        $region43: #{tcn_attention_forward.1} parent=11 // pred_region
          _
        $region44: #{tcn_attention_forward.1} parent=11 // pred_fallthru
          _
        // Predicated region
        $region45: #{tcn_attention_forward.1} parent=11 // pred_check
          %p365 = pneg %p237
        $region46: #{tcn_attention_forward.1} parent=11 // pred_check_branch
          %367 = sbr.rel (%p365) target = $region48
        $region47: #{tcn_attention_forward.1} parent=11 // pred_region
          _
        $region48: #{tcn_attention_forward.1} parent=11 // pred_fallthru
          _
        // Predicated region
        $region49: #{tcn_attention_forward.1} parent=11 // pred_check
          %p368 = pneg %p258
        $region50: #{tcn_attention_forward.1} parent=11 // pred_check_branch
          %370 = sbr.rel (%p368) target = $region52
        $region51: #{tcn_attention_forward.1} parent=11 // pred_region
          _
        $region52: #{tcn_attention_forward.1} parent=11 // pred_fallthru
          _
        // Predicated region
        $region53: #{tcn_attention_forward.1} parent=11 // pred_check
          %p371 = pneg %p279
        $region54: #{tcn_attention_forward.1} parent=11 // pred_check_branch
          %373 = sbr.rel (%p371) target = $region56
        $region55: #{tcn_attention_forward.1} parent=11 // pred_region
          _
        $region56: #{tcn_attention_forward.1} parent=11 // pred_fallthru
          _
        // Predicated region
        $region57: #{tcn_attention_forward.1} parent=11 // pred_check
          %p374 = pneg %p300
        $region58: #{tcn_attention_forward.1} parent=11 // pred_check_branch
          %376 = sbr.rel (%p374) target = $region60
        $region59: #{tcn_attention_forward.1} parent=11 // pred_region
          _
        $region60: #{tcn_attention_forward.1} parent=11 // pred_fallthru
          _
      $region12: #{tcn_attention_forward.1} parent=5 // pred_fallthru
        _
      %p377 = scmp.lt.s32.totalorder %s22, 2
      // Predicated region
      $region61: #{tcn_attention_forward.1} parent=5 // pred_check
        %p378 = pneg %p377
      $region62: #{tcn_attention_forward.1} parent=5 // pred_check_branch
        %380 = sbr.rel (%p378) target = $region64
      $region63: #{tcn_attention_forward.1} parent=5 // pred_region
        // Predicated region
        $region65: #{tcn_attention_forward.1} parent=63 // pred_check
          %p381 = pneg %p42
        $region66: #{tcn_attention_forward.1} parent=63 // pred_check_branch
          %383 = sbr.rel (%p381) target = $region68
        $region67: #{tcn_attention_forward.1} parent=63 // pred_region
          %p384 = scmp.lt.s32.totalorder %s22, 1
          %s385 = scalar_select %p384, %s22, 1
          %s386 = smul.addr %s385, 4
          %s387 = scalar_lea.vmem %s0, %s386
        $region68: #{tcn_attention_forward.1} parent=63 // pred_fallthru
          _
      $region64: #{tcn_attention_forward.1} parent=5 // pred_fallthru
        _
      %p388 = scmp.le.s32.totalorder 1, %s22
      %p389 = scmp.lt.s32.totalorder %s22, 3
      %p390 = pnand %p388, %p389
      %p391 = pneg %p390
      // Predicated region
      $region69: #{tcn_attention_forward.1} parent=5 // pred_check
        _
      $region70: #{tcn_attention_forward.1} parent=5 // pred_check_branch
        %393 = sbr.rel (%p390) target = $region72
      $region71: #{tcn_attention_forward.1} parent=5 // pred_region
        %s394 = ssub.s32 %s22, 1
        %p395 = scmp.lt.s32.totalorder %s27, 1
        %s396 = scalar_select %p395, %s27, 1
        %s397 = smul.addr %s396, 4
        %s398 = scalar_lea.vmem %s0, %s397
        %p399 = pneg %p48
        %p400 = pneg %p45
        %p401 = pneg %p69
        %p402 = pneg %p66
        %p403 = pneg %p90
        %p404 = pneg %p87
        %p405 = pneg %p111
        %p406 = pneg %p108
        %p407 = pneg %p132
        %p408 = pneg %p129
        %p409 = pneg %p153
        %p410 = pneg %p150
        %p411 = pneg %p174
        %p412 = pneg %p171
        %p413 = pneg %p195
        %p414 = pneg %p192
        %p415 = pneg %p216
        %p416 = pneg %p213
        %p417 = pneg %p237
        %p418 = pneg %p234
        %p419 = pneg %p258
        %p420 = pneg %p255
        %p421 = pneg %p279
        %p422 = pneg %p276
        %p423 = pneg %p300
        %p424 = pneg %p297
        %p425 = pneg %p326
        %p426 = pneg %p323
        %s427 = sand.u32 %s313, 1
        %s428 = scalar_lea.sflag [#allocation3], %s427
        %s429 = sand.u32 %s313, 1
        %s430 = scalar_lea.vmem [#allocation2], %s429
        %p431 = scmp.lt.s32.totalorder %s27, 1
        %s432 = scalar_select %p431, %s27, 1
        %s433 = smul.addr %s432, 4
        %s434 = scalar_lea.vmem %s0, %s433
        %v435 = vld [vmem:[%s434] sm:$0xf]
        %v436 = vld [vmem:[%s1] sm:$0xff]
        %v437 = vld [vmem:[%s2] sm:$0xff]
        %439 = vrot.lane.b32.xlu0 %v435, 1
        %v440 = vpop.permute.xlu0 %439
        %vm442 = vcmask 7168
        %v443 = vsel %vm442, 0.0, %v440
        %v445 = vrot.slane %v443, 4
        %446 = vrot.lane.b32.xlu0 %v445, 127
        %v447 = vpop.permute.xlu0 %446
        %vm449 = vcmask 1043456
        %v450 = vsel %vm449, %v443, %v447
        %452 = vset.pattern.permute.xlu0 0
        %453 = vperm.xlu0 %452, %v437
        %v454 = vpop.permute.xlu0 %453
        %vm456 = vcmask 64512
        %v458 = vsel %vm456, %v436, 0
        %460 = vmatprep.subr.mxu0 0.0
        %461 = vmatpush1.msra.mxu0 %v450
        %462 = vmatprep.subr.mxu0 0.0
        %463 = vmatpush1.msra.mxu0 0.0
        %464 = vmatprep.subr.mxu0 0.0
        %465 = vmatpush1.msra.mxu0 0.0
        %466 = vmatprep.subr.mxu0 0.0
        %467 = vmatpush1.msra.mxu0 0.0
        %468 = vmatprep.subr.mxu0 0.0
        %469 = vmatpush1.msra.mxu0 0.0
        %470 = vmatprep.subr.mxu0 0.0
        %471 = vmatpush1.msra.mxu0 0.0
        %472 = vmatprep.subr.mxu0 0.0
        %473 = vmatpush1.msra.mxu0 0.0
        %474 = vmatprep.subr.mxu0 0.0
        %475 = vmatpush1.msra.mxu0 0.0
        %476 = vmatprep.subr.mxu0 0.0
        %477 = vmatpush1.msra.mxu0 0.0
        %478 = vmatprep.subr.mxu0 0.0
        %479 = vmatpush1.msra.mxu0 0.0
        %480 = vmatprep.subr.mxu0 0.0
        %481 = vmatpush1.msra.mxu0 0.0
        %482 = vmatprep.subr.mxu0 0.0
        %483 = vmatpush1.msra.mxu0 0.0
        %484 = vmatprep.subr.mxu0 0.0
        %485 = vmatpush1.msra.mxu0 0.0
        %486 = vmatprep.subr.mxu0 0.0
        %487 = vmatpush1.msra.mxu0 0.0
        %488 = vmatprep.subr.mxu0 0.0
        %489 = vmatpush1.msra.mxu0 0.0
        %490 = vmatprep.subr.mxu0 0.0
        %491 = vmatpush1.msra.mxu0 0.0
        %492 = vmatprep.subr.mxu0 0.0
        %493 = vmatpush1.msra.mxu0 0.0
        %494 = vmatprep.subr.mxu0 0.0
        %495 = vmatpush1.msra.mxu0 0.0
        %496 = vmatprep.subr.mxu0 0.0
        %497 = vmatpush1.msra.mxu0 0.0
        %498 = vmatprep.subr.mxu0 0.0
        %499 = vmatpush1.msra.mxu0 0.0
        %500 = vmatprep.subr.mxu0 0.0
        %501 = vmatpush1.msra.mxu0 0.0
        %502 = vmatprep.subr.mxu0 0.0
        %503 = vmatpush1.msra.mxu0 0.0
        %504 = vmatprep.subr.mxu0 0.0
        %505 = vmatpush1.msra.mxu0 0.0
        %506 = vmatprep.subr.mxu0 0.0
        %507 = vmatpush1.msra.mxu0 0.0
        %508 = vmatprep.subr.mxu0 0.0
        %509 = vmatpush1.msra.mxu0 0.0
        %510 = vmatprep.subr.mxu0 0.0
        %511 = vmatpush1.msra.mxu0 0.0
        %512 = vmatprep.subr.mxu0 0.0
        %513 = vmatpush1.msra.mxu0 0.0
        %514 = vmatprep.subr.mxu0 0.0
        %515 = vmatpush1.msra.mxu0 0.0
        %516 = vmatprep.subr.mxu0 0.0
        %517 = vmatpush1.msra.mxu0 0.0
        %518 = vmatprep.subr.mxu0 0.0
        %519 = vmatpush1.msra.mxu0 0.0
        %520 = vmatprep.subr.mxu0 0.0
        %521 = vmatpush1.msra.mxu0 0.0
        %522 = vmatprep.subr.mxu0 0.0
        %523 = vmatpush1.msra.mxu0 0.0
        %524 = vmatprep.mubr.f32.mxu0 0.0
        %525 = vmatmul.mubr.f32.gmra.mrb[0].mxu0 %v458
        %v526 = vpop.f32.mrb[0].mxu0
        %v527 = vadd.f32 %v454, %v526
        %v528 = vpop.f32.mrb[0].mxu0
        %529 = vdwg.mxu0
        %v530 = vmax.f32 %v527, 0.0
        %v531 = vld [vmem:[%s3] sm:$0xff]
        %v532 = vld [vmem:[%s4] sm:$0xff]
        %534 = vrot.lane.b32.xlu0 %v530, 1
        %v535 = vpop.permute.xlu0 %534
        %v537 = vsel %vm442, 0.0, %v535
        %539 = vrot.lane.b32.xlu0 %v537, 127
        %v540 = vpop.permute.xlu0 %539
        %543 = vset.pattern.permute.xlu0 0
        %544 = vperm.xlu0 %543, %v532
        %v545 = vpop.permute.xlu0 %544
        %vm547 = vcmask 130048
        %v549 = vsel %vm547, %v531, 0
        %551 = vmatprep.subr.mxu0 0.0
        %552 = vmatpush1.msra.mxu0 %v537
        %553 = vmatprep.subr.mxu0 0.0
        %554 = vmatpush1.msra.mxu0 %v540
        %555 = vmatprep.subr.mxu0 0.0
        %556 = vmatpush1.msra.mxu0 0.0
        %557 = vmatprep.subr.mxu0 0.0
        %558 = vmatpush1.msra.mxu0 0.0
        %559 = vmatprep.subr.mxu0 0.0
        %560 = vmatpush1.msra.mxu0 0.0
        %561 = vmatprep.subr.mxu0 0.0
        %562 = vmatpush1.msra.mxu0 0.0
        %563 = vmatprep.subr.mxu0 0.0
        %564 = vmatpush1.msra.mxu0 0.0
        %565 = vmatprep.subr.mxu0 0.0
        %566 = vmatpush1.msra.mxu0 0.0
        %567 = vmatprep.subr.mxu0 0.0
        %568 = vmatpush1.msra.mxu0 0.0
        %569 = vmatprep.subr.mxu0 0.0
        %570 = vmatpush1.msra.mxu0 0.0
        %571 = vmatprep.subr.mxu0 0.0
        %572 = vmatpush1.msra.mxu0 0.0
        %573 = vmatprep.subr.mxu0 0.0
        %574 = vmatpush1.msra.mxu0 0.0
        %575 = vmatprep.subr.mxu0 0.0
        %576 = vmatpush1.msra.mxu0 0.0
        %577 = vmatprep.subr.mxu0 0.0
        %578 = vmatpush1.msra.mxu0 0.0
        %579 = vmatprep.subr.mxu0 0.0
        %580 = vmatpush1.msra.mxu0 0.0
        %581 = vmatprep.subr.mxu0 0.0
        %582 = vmatpush1.msra.mxu0 0.0
        %583 = vmatprep.subr.mxu0 0.0
        %584 = vmatpush1.msra.mxu0 0.0
        %585 = vmatprep.subr.mxu0 0.0
        %586 = vmatpush1.msra.mxu0 0.0
        %587 = vmatprep.subr.mxu0 0.0
        %588 = vmatpush1.msra.mxu0 0.0
        %589 = vmatprep.subr.mxu0 0.0
        %590 = vmatpush1.msra.mxu0 0.0
        %591 = vmatprep.subr.mxu0 0.0
        %592 = vmatpush1.msra.mxu0 0.0
        %593 = vmatprep.subr.mxu0 0.0
        %594 = vmatpush1.msra.mxu0 0.0
        %595 = vmatprep.subr.mxu0 0.0
        %596 = vmatpush1.msra.mxu0 0.0
        %597 = vmatprep.subr.mxu0 0.0
        %598 = vmatpush1.msra.mxu0 0.0
        %599 = vmatprep.subr.mxu0 0.0
        %600 = vmatpush1.msra.mxu0 0.0
        %601 = vmatprep.subr.mxu0 0.0
        %602 = vmatpush1.msra.mxu0 0.0
        %603 = vmatprep.subr.mxu0 0.0
        %604 = vmatpush1.msra.mxu0 0.0
        %605 = vmatprep.subr.mxu0 0.0
        %606 = vmatpush1.msra.mxu0 0.0
        %607 = vmatprep.subr.mxu0 0.0
        %608 = vmatpush1.msra.mxu0 0.0
        %609 = vmatprep.subr.mxu0 0.0
        %610 = vmatpush1.msra.mxu0 0.0
        %611 = vmatprep.subr.mxu0 0.0
        %612 = vmatpush1.msra.mxu0 0.0
        %613 = vmatprep.subr.mxu0 0.0
        %614 = vmatpush1.msra.mxu0 0.0
        %615 = vmatprep.mubr.f32.mxu0 0.0
        %616 = vmatmul.mubr.f32.gmra.mrb[0].mxu0 %v549
        %v617 = vpop.f32.mrb[0].mxu0
        %v618 = vadd.f32 %v545, %v617
        %v619 = vpop.f32.mrb[0].mxu0
        %620 = vdwg.mxu0
        %v621 = vmax.f32 %v618, 0.0
        %v622 = vld [vmem:[%s5] sm:$0xff]
        %v623 = vld [vmem:[%s6] sm:$0xff]
        %625 = vset.pattern.permute.xlu0 0
        %626 = vperm.xlu0 %625, %v623
        %v627 = vpop.permute.xlu0 %626
        %vm629 = vcmask 31744
        %v631 = vsel %vm629, %v622, 0
        %v633 = vsel %vm449, %v435, 0
        %635 = vmatprep.subr.mxu0 0.0
        %636 = vmatpush1.msra.mxu0 %v633
        %637 = vmatprep.subr.mxu0 0.0
        %638 = vmatpush1.msra.mxu0 0.0
        %639 = vmatprep.subr.mxu0 0.0
        %640 = vmatpush1.msra.mxu0 0.0
        %641 = vmatprep.subr.mxu0 0.0
        %642 = vmatpush1.msra.mxu0 0.0
        %643 = vmatprep.subr.mxu0 0.0
        %644 = vmatpush1.msra.mxu0 0.0
        %645 = vmatprep.subr.mxu0 0.0
        %646 = vmatpush1.msra.mxu0 0.0
        %647 = vmatprep.subr.mxu0 0.0
        %648 = vmatpush1.msra.mxu0 0.0
        %649 = vmatprep.subr.mxu0 0.0
        %650 = vmatpush1.msra.mxu0 0.0
        %651 = vmatprep.subr.mxu0 0.0
        %652 = vmatpush1.msra.mxu0 0.0
        %653 = vmatprep.subr.mxu0 0.0
        %654 = vmatpush1.msra.mxu0 0.0
        %655 = vmatprep.subr.mxu0 0.0
        %656 = vmatpush1.msra.mxu0 0.0
        %657 = vmatprep.subr.mxu0 0.0
        %658 = vmatpush1.msra.mxu0 0.0
        %659 = vmatprep.subr.mxu0 0.0
        %660 = vmatpush1.msra.mxu0 0.0
        %661 = vmatprep.subr.mxu0 0.0
        %662 = vmatpush1.msra.mxu0 0.0
        %663 = vmatprep.subr.mxu0 0.0
        %664 = vmatpush1.msra.mxu0 0.0
        %665 = vmatprep.subr.mxu0 0.0
        %666 = vmatpush1.msra.mxu0 0.0
        %667 = vmatprep.subr.mxu0 0.0
        %668 = vmatpush1.msra.mxu0 0.0
        %669 = vmatprep.subr.mxu0 0.0
        %670 = vmatpush1.msra.mxu0 0.0
        %671 = vmatprep.subr.mxu0 0.0
        %672 = vmatpush1.msra.mxu0 0.0
        %673 = vmatprep.subr.mxu0 0.0
        %674 = vmatpush1.msra.mxu0 0.0
        %675 = vmatprep.subr.mxu0 0.0
        %676 = vmatpush1.msra.mxu0 0.0
        %677 = vmatprep.subr.mxu0 0.0
        %678 = vmatpush1.msra.mxu0 0.0
        %679 = vmatprep.subr.mxu0 0.0
        %680 = vmatpush1.msra.mxu0 0.0
        %681 = vmatprep.subr.mxu0 0.0
        %682 = vmatpush1.msra.mxu0 0.0
        %683 = vmatprep.subr.mxu0 0.0
        %684 = vmatpush1.msra.mxu0 0.0
        %685 = vmatprep.subr.mxu0 0.0
        %686 = vmatpush1.msra.mxu0 0.0
        %687 = vmatprep.subr.mxu0 0.0
        %688 = vmatpush1.msra.mxu0 0.0
        %689 = vmatprep.subr.mxu0 0.0
        %690 = vmatpush1.msra.mxu0 0.0
        %691 = vmatprep.subr.mxu0 0.0
        %692 = vmatpush1.msra.mxu0 0.0
        %693 = vmatprep.subr.mxu0 0.0
        %694 = vmatpush1.msra.mxu0 0.0
        %695 = vmatprep.subr.mxu0 0.0
        %696 = vmatpush1.msra.mxu0 0.0
        %697 = vmatprep.subr.mxu0 0.0
        %698 = vmatpush1.msra.mxu0 0.0
        %699 = vmatprep.mubr.f32.mxu0 0.0
        %700 = vmatmul.mubr.f32.gmra.mrb[0].mxu0 %v631
        %v701 = vpop.f32.mrb[0].mxu0
        %v702 = vadd.f32 %v627, %v701
        %v703 = vpop.f32.mrb[0].mxu0
        %704 = vdwg.mxu0
        %v705 = vadd.f32 %v621, %v702
        %v706 = vmax.f32 %v705, 0.0
        %v707 = vld [vmem:[%s7] sm:$0xff]
        %v708 = vld [vmem:[%s8] sm:$0xff]
        %710 = vrot.lane.b32.xlu0 %v706, 2
        %v711 = vpop.permute.xlu0 %710
        %vm713 = vcmask 15360
        %v714 = vsel %vm713, 0.0, %v711
        %716 = vrot.lane.b32.xlu0 %v714, 126
        %v717 = vpop.permute.xlu0 %716
        %720 = vset.pattern.permute.xlu0 0
        %721 = vperm.xlu0 %720, %v708
        %v722 = vpop.permute.xlu0 %721
        %v725 = vsel %vm547, %v707, 0
        %727 = vmatprep.subr.mxu0 0.0
        %728 = vmatpush1.msra.mxu0 %v714
        %729 = vmatprep.subr.mxu0 0.0
        %730 = vmatpush1.msra.mxu0 %v717
        %731 = vmatprep.subr.mxu0 0.0
        %732 = vmatpush1.msra.mxu0 0.0
        %733 = vmatprep.subr.mxu0 0.0
        %734 = vmatpush1.msra.mxu0 0.0
        %735 = vmatprep.subr.mxu0 0.0
        %736 = vmatpush1.msra.mxu0 0.0
        %737 = vmatprep.subr.mxu0 0.0
        %738 = vmatpush1.msra.mxu0 0.0
        %739 = vmatprep.subr.mxu0 0.0
        %740 = vmatpush1.msra.mxu0 0.0
        %741 = vmatprep.subr.mxu0 0.0
        %742 = vmatpush1.msra.mxu0 0.0
        %743 = vmatprep.subr.mxu0 0.0
        %744 = vmatpush1.msra.mxu0 0.0
        %745 = vmatprep.subr.mxu0 0.0
        %746 = vmatpush1.msra.mxu0 0.0
        %747 = vmatprep.subr.mxu0 0.0
        %748 = vmatpush1.msra.mxu0 0.0
        %749 = vmatprep.subr.mxu0 0.0
        %750 = vmatpush1.msra.mxu0 0.0
        %751 = vmatprep.subr.mxu0 0.0
        %752 = vmatpush1.msra.mxu0 0.0
        %753 = vmatprep.subr.mxu0 0.0
        %754 = vmatpush1.msra.mxu0 0.0
        %755 = vmatprep.subr.mxu0 0.0
        %756 = vmatpush1.msra.mxu0 0.0
        %757 = vmatprep.subr.mxu0 0.0
        %758 = vmatpush1.msra.mxu0 0.0
        %759 = vmatprep.subr.mxu0 0.0
        %760 = vmatpush1.msra.mxu0 0.0
        %761 = vmatprep.subr.mxu0 0.0
        %762 = vmatpush1.msra.mxu0 0.0
        %763 = vmatprep.subr.mxu0 0.0
        %764 = vmatpush1.msra.mxu0 0.0
        %765 = vmatprep.subr.mxu0 0.0
        %766 = vmatpush1.msra.mxu0 0.0
        %767 = vmatprep.subr.mxu0 0.0
        %768 = vmatpush1.msra.mxu0 0.0
        %769 = vmatprep.subr.mxu0 0.0
        %770 = vmatpush1.msra.mxu0 0.0
        %771 = vmatprep.subr.mxu0 0.0
        %772 = vmatpush1.msra.mxu0 0.0
        %773 = vmatprep.subr.mxu0 0.0
        %774 = vmatpush1.msra.mxu0 0.0
        %775 = vmatprep.subr.mxu0 0.0
        %776 = vmatpush1.msra.mxu0 0.0
        %777 = vmatprep.subr.mxu0 0.0
        %778 = vmatpush1.msra.mxu0 0.0
        %779 = vmatprep.subr.mxu0 0.0
        %780 = vmatpush1.msra.mxu0 0.0
        %781 = vmatprep.subr.mxu0 0.0
        %782 = vmatpush1.msra.mxu0 0.0
        %783 = vmatprep.subr.mxu0 0.0
        %784 = vmatpush1.msra.mxu0 0.0
        %785 = vmatprep.subr.mxu0 0.0
        %786 = vmatpush1.msra.mxu0 0.0
        %787 = vmatprep.subr.mxu0 0.0
        %788 = vmatpush1.msra.mxu0 0.0
        %789 = vmatprep.subr.mxu0 0.0
        %790 = vmatpush1.msra.mxu0 0.0
        %791 = vmatprep.mubr.f32.mxu0 0.0
        %792 = vmatmul.mubr.f32.gmra.mrb[0].mxu0 %v725
        %v793 = vpop.f32.mrb[0].mxu0
        %v794 = vadd.f32 %v722, %v793
        %v795 = vpop.f32.mrb[0].mxu0
        %796 = vdwg.mxu0
        %v797 = vmax.f32 %v794, 0.0
        %v798 = vld [vmem:[%s9] sm:$0xff]
        %v799 = vld [vmem:[%s10] sm:$0xff]
        %801 = vrot.lane.b32.xlu0 %v797, 2
        %v802 = vpop.permute.xlu0 %801
        %v804 = vsel %vm713, 0.0, %v802
        %806 = vrot.lane.b32.xlu0 %v804, 126
        %v807 = vpop.permute.xlu0 %806
        %810 = vset.pattern.permute.xlu0 0
        %811 = vperm.xlu0 %810, %v799
        %v812 = vpop.permute.xlu0 %811
        %v815 = vsel %vm547, %v798, 0
        %817 = vmatprep.subr.mxu0 0.0
        %818 = vmatpush1.msra.mxu0 %v804
        %819 = vmatprep.subr.mxu0 0.0
        %820 = vmatpush1.msra.mxu0 %v807
        %821 = vmatprep.subr.mxu0 0.0
        %822 = vmatpush1.msra.mxu0 0.0
        %823 = vmatprep.subr.mxu0 0.0
        %824 = vmatpush1.msra.mxu0 0.0
        %825 = vmatprep.subr.mxu0 0.0
        %826 = vmatpush1.msra.mxu0 0.0
        %827 = vmatprep.subr.mxu0 0.0
        %828 = vmatpush1.msra.mxu0 0.0
        %829 = vmatprep.subr.mxu0 0.0
        %830 = vmatpush1.msra.mxu0 0.0
        %831 = vmatprep.subr.mxu0 0.0
        %832 = vmatpush1.msra.mxu0 0.0
        %833 = vmatprep.subr.mxu0 0.0
        %834 = vmatpush1.msra.mxu0 0.0
        %835 = vmatprep.subr.mxu0 0.0
        %836 = vmatpush1.msra.mxu0 0.0
        %837 = vmatprep.subr.mxu0 0.0
        %838 = vmatpush1.msra.mxu0 0.0
        %839 = vmatprep.subr.mxu0 0.0
        %840 = vmatpush1.msra.mxu0 0.0
        %841 = vmatprep.subr.mxu0 0.0
        %842 = vmatpush1.msra.mxu0 0.0
        %843 = vmatprep.subr.mxu0 0.0
        %844 = vmatpush1.msra.mxu0 0.0
        %845 = vmatprep.subr.mxu0 0.0
        %846 = vmatpush1.msra.mxu0 0.0
        %847 = vmatprep.subr.mxu0 0.0
        %848 = vmatpush1.msra.mxu0 0.0
        %849 = vmatprep.subr.mxu0 0.0
        %850 = vmatpush1.msra.mxu0 0.0
        %851 = vmatprep.subr.mxu0 0.0
        %852 = vmatpush1.msra.mxu0 0.0
        %853 = vmatprep.subr.mxu0 0.0
        %854 = vmatpush1.msra.mxu0 0.0
        %855 = vmatprep.subr.mxu0 0.0
        %856 = vmatpush1.msra.mxu0 0.0
        %857 = vmatprep.subr.mxu0 0.0
        %858 = vmatpush1.msra.mxu0 0.0
        %859 = vmatprep.subr.mxu0 0.0
        %860 = vmatpush1.msra.mxu0 0.0
        %861 = vmatprep.subr.mxu0 0.0
        %862 = vmatpush1.msra.mxu0 0.0
        %863 = vmatprep.subr.mxu0 0.0
        %864 = vmatpush1.msra.mxu0 0.0
        %865 = vmatprep.subr.mxu0 0.0
        %866 = vmatpush1.msra.mxu0 0.0
        %867 = vmatprep.subr.mxu0 0.0
        %868 = vmatpush1.msra.mxu0 0.0
        %869 = vmatprep.subr.mxu0 0.0
        %870 = vmatpush1.msra.mxu0 0.0
        %871 = vmatprep.subr.mxu0 0.0
        %872 = vmatpush1.msra.mxu0 0.0
        %873 = vmatprep.subr.mxu0 0.0
        %874 = vmatpush1.msra.mxu0 0.0
        %875 = vmatprep.subr.mxu0 0.0
        %876 = vmatpush1.msra.mxu0 0.0
        %877 = vmatprep.subr.mxu0 0.0
        %878 = vmatpush1.msra.mxu0 0.0
        %879 = vmatprep.subr.mxu0 0.0
        %880 = vmatpush1.msra.mxu0 0.0
        %881 = vmatprep.mubr.f32.mxu0 0.0
        %882 = vmatmul.mubr.f32.gmra.mrb[0].mxu0 %v815
        %v883 = vpop.f32.mrb[0].mxu0
        %v884 = vadd.f32 %v812, %v883
        %v885 = vpop.f32.mrb[0].mxu0
        %886 = vdwg.mxu0
        %v887 = vmax.f32 %v884, 0.0
        %v888 = vadd.f32 %v887, %v706
        %v889 = vmax.f32 %v888, 0.0
        %v891 = vsel %vm547, %v889, 0
        %893 = vmatprep.subr.mxu0 0.0
        %894 = vmatpush1.xpose.msra.mxu0 %v891
        %895 = vmatprep.subr.mxu0 0.0
        %896 = vmatpush1.xpose.msra.mxu0 0.0
        %897 = vmatprep.subr.mxu0 0.0
        %898 = vmatpush1.xpose.msra.mxu0 0.0
        %899 = vmatprep.subr.mxu0 0.0
        %900 = vmatpush1.xpose.msra.mxu0 0.0
        %901 = vmatprep.subr.mxu0 0.0
        %902 = vmatpush1.xpose.msra.mxu0 0.0
        %903 = vmatprep.subr.mxu0 0.0
        %904 = vmatpush1.xpose.msra.mxu0 0.0
        %905 = vmatprep.subr.mxu0 0.0
        %906 = vmatpush1.xpose.msra.mxu0 0.0
        %907 = vmatprep.subr.mxu0 0.0
        %908 = vmatpush1.xpose.msra.mxu0 0.0
        %909 = vmatprep.subr.mxu0 0.0
        %910 = vmatpush1.xpose.msra.mxu0 0.0
        %911 = vmatprep.subr.mxu0 0.0
        %912 = vmatpush1.xpose.msra.mxu0 0.0
        %913 = vmatprep.subr.mxu0 0.0
        %914 = vmatpush1.xpose.msra.mxu0 0.0
        %915 = vmatprep.subr.mxu0 0.0
        %916 = vmatpush1.xpose.msra.mxu0 0.0
        %917 = vmatprep.subr.mxu0 0.0
        %918 = vmatpush1.xpose.msra.mxu0 0.0
        %919 = vmatprep.subr.mxu0 0.0
        %920 = vmatpush1.xpose.msra.mxu0 0.0
        %921 = vmatprep.subr.mxu0 0.0
        %922 = vmatpush1.xpose.msra.mxu0 0.0
        %923 = vmatprep.subr.mxu0 0.0
        %924 = vmatpush1.xpose.msra.mxu0 0.0
        %925 = vmatprep.subr.mxu0 0.0
        %926 = vmatpush1.xpose.msra.mxu0 0.0
        %927 = vmatprep.subr.mxu0 0.0
        %928 = vmatpush1.xpose.msra.mxu0 0.0
        %929 = vmatprep.subr.mxu0 0.0
        %930 = vmatpush1.xpose.msra.mxu0 0.0
        %931 = vmatprep.subr.mxu0 0.0
        %932 = vmatpush1.xpose.msra.mxu0 0.0
        %933 = vmatprep.subr.mxu0 0.0
        %934 = vmatpush1.xpose.msra.mxu0 0.0
        %935 = vmatprep.subr.mxu0 0.0
        %936 = vmatpush1.xpose.msra.mxu0 0.0
        %937 = vmatprep.subr.mxu0 0.0
        %938 = vmatpush1.xpose.msra.mxu0 0.0
        %939 = vmatprep.subr.mxu0 0.0
        %940 = vmatpush1.xpose.msra.mxu0 0.0
        %941 = vmatprep.subr.mxu0 0.0
        %942 = vmatpush1.xpose.msra.mxu0 0.0
        %943 = vmatprep.subr.mxu0 0.0
        %944 = vmatpush1.xpose.msra.mxu0 0.0
        %945 = vmatprep.subr.mxu0 0.0
        %946 = vmatpush1.xpose.msra.mxu0 0.0
        %947 = vmatprep.subr.mxu0 0.0
        %948 = vmatpush1.xpose.msra.mxu0 0.0
        %949 = vmatprep.subr.mxu0 0.0
        %950 = vmatpush1.xpose.msra.mxu0 0.0
        %951 = vmatprep.subr.mxu0 0.0
        %952 = vmatpush1.xpose.msra.mxu0 0.0
        %953 = vmatprep.subr.mxu0 0.0
        %954 = vmatpush1.xpose.msra.mxu0 0.0
        %955 = vmatprep.subr.mxu0 0.0
        %956 = vmatpush1.xpose.msra.mxu0 0.0
        %957 = vmatprep.mubr.f32.mxu0 0.0
        %958 = vmatmul.mubr.f32.gmra.mrb[0].mxu0 %v891
        %v959 = vpop.f32.mrb[0].mxu0
        %v960 = vadd.f32 0.0, %v959
        %v961 = vpop.f32.mrb[0].mxu0
        %962 = vdwg.mxu0
        %v963 = vmul.f32 %v960, 0.25
        %v964 = vsel %vm456, %v963, -inf
        %965 = vmax.xlane.f32.xlu0 %v964
        %v966 = vpop.xlane.xlu0 %965
        %v967 = vsub.f32 %v963, %v966
        %v968 = vmul.f32 %v967, 1.442695
        %v969 = vpow.pop %v968
        %v970 = vsel %vm456, %v969, 0.0
        %971 = vadd.xlane.f32.xlu0 %v970
        %v972 = vpop.xlane.xlu0 %971
        %v973 = vrcp.pop %v972
        %v974 = vmul.f32 %v969, %v973
        %v976 = vsel %vm456, %v974, 0
        %978 = vmatprep.subr.mxu0 0.0
        %979 = vmatpush1.msra.mxu0 %v889
        %980 = vmatprep.subr.mxu0 0.0
        %981 = vmatpush1.msra.mxu0 0.0
        %982 = vmatprep.subr.mxu0 0.0
        %983 = vmatpush1.msra.mxu0 0.0
        %984 = vmatprep.subr.mxu0 0.0
        %985 = vmatpush1.msra.mxu0 0.0
        %986 = vmatprep.subr.mxu0 0.0
        %987 = vmatpush1.msra.mxu0 0.0
        %988 = vmatprep.subr.mxu0 0.0
        %989 = vmatpush1.msra.mxu0 0.0
        %990 = vmatprep.subr.mxu0 0.0
        %991 = vmatpush1.msra.mxu0 0.0
        %992 = vmatprep.subr.mxu0 0.0
        %993 = vmatpush1.msra.mxu0 0.0
        %994 = vmatprep.subr.mxu0 0.0
        %995 = vmatpush1.msra.mxu0 0.0
        %996 = vmatprep.subr.mxu0 0.0
        %997 = vmatpush1.msra.mxu0 0.0
        %998 = vmatprep.subr.mxu0 0.0
        %999 = vmatpush1.msra.mxu0 0.0
        %1000 = vmatprep.subr.mxu0 0.0
        %1001 = vmatpush1.msra.mxu0 0.0
        %1002 = vmatprep.subr.mxu0 0.0
        %1003 = vmatpush1.msra.mxu0 0.0
        %1004 = vmatprep.subr.mxu0 0.0
        %1005 = vmatpush1.msra.mxu0 0.0
        %1006 = vmatprep.subr.mxu0 0.0
        %1007 = vmatpush1.msra.mxu0 0.0
        %1008 = vmatprep.subr.mxu0 0.0
        %1009 = vmatpush1.msra.mxu0 0.0
        %1010 = vmatprep.subr.mxu0 0.0
        %1011 = vmatpush1.msra.mxu0 0.0
        %1012 = vmatprep.subr.mxu0 0.0
        %1013 = vmatpush1.msra.mxu0 0.0
        %1014 = vmatprep.subr.mxu0 0.0
        %1015 = vmatpush1.msra.mxu0 0.0
        %1016 = vmatprep.subr.mxu0 0.0
        %1017 = vmatpush1.msra.mxu0 0.0
        %1018 = vmatprep.subr.mxu0 0.0
        %1019 = vmatpush1.msra.mxu0 0.0
        %1020 = vmatprep.subr.mxu0 0.0
        %1021 = vmatpush1.msra.mxu0 0.0
        %1022 = vmatprep.subr.mxu0 0.0
        %1023 = vmatpush1.msra.mxu0 0.0
        %1024 = vmatprep.subr.mxu0 0.0
        %1025 = vmatpush1.msra.mxu0 0.0
        %1026 = vmatprep.subr.mxu0 0.0
        %1027 = vmatpush1.msra.mxu0 0.0
        %1028 = vmatprep.subr.mxu0 0.0
        %1029 = vmatpush1.msra.mxu0 0.0
        %1030 = vmatprep.subr.mxu0 0.0
        %1031 = vmatpush1.msra.mxu0 0.0
        %1032 = vmatprep.subr.mxu0 0.0
        %1033 = vmatpush1.msra.mxu0 0.0
        %1034 = vmatprep.subr.mxu0 0.0
        %1035 = vmatpush1.msra.mxu0 0.0
        %1036 = vmatprep.subr.mxu0 0.0
        %1037 = vmatpush1.msra.mxu0 0.0
        %1038 = vmatprep.subr.mxu0 0.0
        %1039 = vmatpush1.msra.mxu0 0.0
        %1040 = vmatprep.subr.mxu0 0.0
        %1041 = vmatpush1.msra.mxu0 0.0
        %1042 = vmatprep.mubr.f32.mxu0 0.0
        %1043 = vmatmul.mubr.f32.gmra.mrb[0].mxu0 %v976
        %v1044 = vpop.f32.mrb[0].mxu0
        %v1045 = vadd.f32 0.0, %v1044
        %v1046 = vpop.f32.mrb[0].mxu0
        %1047 = vdwg.mxu0
        %v1048 = vld [vmem:[%s11] sm:$0xff]
        %v1049 = vld [vmem:[%s11 + $0x8] sm:$0xff]
        %v1051 = vsel %vm547, %v1045, 0
        %1053 = vmatprep.subr.mxu0 0.0
        %1054 = vmatpush1.msra.mxu0 %v1048
        %1055 = vmatprep.subr.mxu0 0.0
        %1056 = vmatpush1.msra.mxu0 %v1049
        %1057 = vmatprep.subr.mxu0 0.0
        %1058 = vmatpush1.msra.mxu0 0.0
        %1059 = vmatprep.subr.mxu0 0.0
        %1060 = vmatpush1.msra.mxu0 0.0
        %1061 = vmatprep.subr.mxu0 0.0
        %1062 = vmatpush1.msra.mxu0 0.0
        %1063 = vmatprep.subr.mxu0 0.0
        %1064 = vmatpush1.msra.mxu0 0.0
        %1065 = vmatprep.subr.mxu0 0.0
        %1066 = vmatpush1.msra.mxu0 0.0
        %1067 = vmatprep.subr.mxu0 0.0
        %1068 = vmatpush1.msra.mxu0 0.0
        %1069 = vmatprep.subr.mxu0 0.0
        %1070 = vmatpush1.msra.mxu0 0.0
        %1071 = vmatprep.subr.mxu0 0.0
        %1072 = vmatpush1.msra.mxu0 0.0
        %1073 = vmatprep.subr.mxu0 0.0
        %1074 = vmatpush1.msra.mxu0 0.0
        %1075 = vmatprep.subr.mxu0 0.0
        %1076 = vmatpush1.msra.mxu0 0.0
        %1077 = vmatprep.subr.mxu0 0.0
        %1078 = vmatpush1.msra.mxu0 0.0
        %1079 = vmatprep.subr.mxu0 0.0
        %1080 = vmatpush1.msra.mxu0 0.0
        %1081 = vmatprep.subr.mxu0 0.0
        %1082 = vmatpush1.msra.mxu0 0.0
        %1083 = vmatprep.subr.mxu0 0.0
        %1084 = vmatpush1.msra.mxu0 0.0
        %1085 = vmatprep.subr.mxu0 0.0
        %1086 = vmatpush1.msra.mxu0 0.0
        %1087 = vmatprep.subr.mxu0 0.0
        %1088 = vmatpush1.msra.mxu0 0.0
        %1089 = vmatprep.subr.mxu0 0.0
        %1090 = vmatpush1.msra.mxu0 0.0
        %1091 = vmatprep.subr.mxu0 0.0
        %1092 = vmatpush1.msra.mxu0 0.0
        %1093 = vmatprep.subr.mxu0 0.0
        %1094 = vmatpush1.msra.mxu0 0.0
        %1095 = vmatprep.subr.mxu0 0.0
        %1096 = vmatpush1.msra.mxu0 0.0
        %1097 = vmatprep.subr.mxu0 0.0
        %1098 = vmatpush1.msra.mxu0 0.0
        %1099 = vmatprep.subr.mxu0 0.0
        %1100 = vmatpush1.msra.mxu0 0.0
        %1101 = vmatprep.subr.mxu0 0.0
        %1102 = vmatpush1.msra.mxu0 0.0
        %1103 = vmatprep.subr.mxu0 0.0
        %1104 = vmatpush1.msra.mxu0 0.0
        %1105 = vmatprep.subr.mxu0 0.0
        %1106 = vmatpush1.msra.mxu0 0.0
        %1107 = vmatprep.subr.mxu0 0.0
        %1108 = vmatpush1.msra.mxu0 0.0
        %1109 = vmatprep.subr.mxu0 0.0
        %1110 = vmatpush1.msra.mxu0 0.0
        %1111 = vmatprep.subr.mxu0 0.0
        %1112 = vmatpush1.msra.mxu0 0.0
        %1113 = vmatprep.subr.mxu0 0.0
        %1114 = vmatpush1.msra.mxu0 0.0
        %1115 = vmatprep.subr.mxu0 0.0
        %1116 = vmatpush1.msra.mxu0 0.0
        %1117 = vmatprep.mubr.f32.mxu0 0.0
        %1118 = vmatmul.mubr.f32.gmra.mrb[0].mxu0 %v1051
        %v1119 = vpop.f32.mrb[0].mxu0
        %v1120 = vadd.f32 0.0, %v1119
        %v1121 = vpop.f32.mrb[0].mxu0
        %1122 = vdwg.mxu0
        %v1123 = vld [vmem:[%s12] sm:$0x1]
        %v1124 = vadd.f32 %v1123, %v1120
        %v1127 = vunpack.c.l.s4 1966171168
        %v1128 = vunpack.c.0.s8 %v1127
        %v1129 = vlaneseq
        %v1130 = vshrl.u32 %v1129, 7
        %v1131 = vsub.s32 %v1128, %v1130
        %v1132 = vrot.slane %v1120, %v1131
        %v1133 = vcombine.high %v1132, %v1132
        %v1135 = vunpack.c.l.s4 1966171168
        %v1136 = vunpack.c.0.s8 %v1135
        %v1137 = vlaneseq
        %v1138 = vshrl.u32 %v1137, 7
        %v1139 = vsub.s32 %v1136, %v1138
        %v1140 = vrot.slane %v1132, %v1139
        %v1142 = vunpack.c.l.s4 1966171168
        %v1143 = vunpack.c.0.s8 %v1142
        %v1144 = vlaneseq
        %v1145 = vshrl.u32 %v1144, 7
        %v1146 = vsub.s32 %v1143, %v1145
        %v1147 = vrot.slane %v1133, %v1146
        %1148 = vrot.lane.b32.xlu0 %v1147, 124
        %v1149 = vpop.permute.xlu0 %1148
        %v1151 = vadd.f32 %v1124, %v1149
        %v1152 = vcombine.high %v1140, %v1140
        %1153 = vrot.lane.b32.xlu0 %v1152, 120
        %v1154 = vpop.permute.xlu0 %1153
        %v1156 = vadd.f32 %v1151, %v1154
        %v1157 = vcombine.high %v1147, %v1147
        %1158 = vrot.lane.b32.xlu0 %v1157, 116
        %v1159 = vpop.permute.xlu0 %1158
        %v1161 = vadd.f32 %v1156, %v1159
        %v1162 = vcombine.high %v1120, %v1120
        %v1164 = vunpack.c.l.s4 1966171168
        %v1165 = vunpack.c.0.s8 %v1164
        %v1166 = vlaneseq
        %v1167 = vshrl.u32 %v1166, 7
        %v1168 = vsub.s32 %v1165, %v1167
        %v1169 = vrot.slane %v1162, %v1168
        %v1171 = vunpack.c.l.s4 1966171168
        %v1172 = vunpack.c.0.s8 %v1171
        %v1173 = vlaneseq
        %v1174 = vshrl.u32 %v1173, 7
        %v1175 = vsub.s32 %v1172, %v1174
        %v1176 = vrot.slane %v1169, %v1175
        %1177 = vrot.lane.b32.xlu0 %v1176, 112
        %v1178 = vpop.permute.xlu0 %1177
        %v1180 = vadd.f32 %v1161, %v1178
        %v1181 = vcombine.high %v1169, %v1169
        %v1183 = vunpack.c.l.s4 1966171168
        %v1184 = vunpack.c.0.s8 %v1183
        %v1185 = vlaneseq
        %v1186 = vshrl.u32 %v1185, 7
        %v1187 = vsub.s32 %v1184, %v1186
        %v1188 = vrot.slane %v1181, %v1187
        %1189 = vrot.lane.b32.xlu0 %v1188, 108
        %v1190 = vpop.permute.xlu0 %1189
        %v1192 = vadd.f32 %v1180, %v1190
        %v1193 = vcombine.high %v1176, %v1176
        %1194 = vrot.lane.b32.xlu0 %v1193, 104
        %v1195 = vpop.permute.xlu0 %1194
        %v1197 = vadd.f32 %v1192, %v1195
        %v1198 = vcombine.high %v1188, %v1188
        %1199 = vrot.lane.b32.xlu0 %v1198, 100
        %v1200 = vpop.permute.xlu0 %1199
        %v1202 = vadd.f32 %v1197, %v1200
        %vm1203 = vcmask 24576
        %1204 = vst.msk [vmem:[%s430] sm:$0x1] %vm1203, %v1202
        %s1205 = sand.u32 %s313, 1
        %s1206 = scalar_lea.sflag [#allocation3], %s1205
        %s1207 = sand.u32 %s313, 1
        %s1208 = scalar_lea.vmem [#allocation2], %s1207
        // Predicated region
        $region73: #{tcn_attention_forward.1} parent=71 // pred_check
          %p1209 = pneg %p323
        $region74: #{tcn_attention_forward.1} parent=71 // pred_check_branch
          %1211 = sbr.rel (%p1209) target = $region76
        $region75: #{tcn_attention_forward.1} parent=71 // pred_region
          %s1213 = ssub.s32 16, 16
          %1214 = vsyncadd %s1206, %s1213
          %s1215 = smul.addr %s27, 16
          %s1216 = scalar_lea.hbm %s13, %s1215
          %s1218 = sshll.u32 %s1208, 4
          %s1219 = int_to_ptr.vmem [resolvable:$true] %s1218
          %1221 = dma.vmem_to_hbm [thread:$0]  %s1219, 16, %s1216, %s1206
        $region76: #{tcn_attention_forward.1} parent=71 // pred_fallthru
          _
      $region72: #{tcn_attention_forward.1} parent=5 // pred_fallthru
        _
      %p1222 = scmp.le.s32.totalorder 2, %s22
      // Predicated region
      $region77: #{tcn_attention_forward.1} parent=5 // pred_check
        %p1223 = pneg %p1222
      $region78: #{tcn_attention_forward.1} parent=5 // pred_check_branch
        %1225 = sbr.rel (%p1223) target = $region80
      $region79: #{tcn_attention_forward.1} parent=5 // pred_region
        %s1226 = ssub.s32 %s22, 2
        // Predicated region
        $region81: #{tcn_attention_forward.1} parent=79 // pred_check
          %p1227 = pneg %p329
        $region82: #{tcn_attention_forward.1} parent=79 // pred_check_branch
          %1229 = sbr.rel (%p1227) target = $region84
        $region83: #{tcn_attention_forward.1} parent=79 // pred_region
          %s1230 = sand.u32 %s314, 1
          %s1231 = scalar_lea.sflag [#allocation3], %s1230
          %s1232 = sand.u32 %s314, 1
          %s1233 = scalar_lea.vmem [#allocation2], %s1232
          %1234 = dma.done %s1231, 16
        $region84: #{tcn_attention_forward.1} parent=79 // pred_fallthru
          _
      $region80: #{tcn_attention_forward.1} parent=5 // pred_fallthru
        _
    $region6: #{tcn_attention_forward.1} parent=1 // loop_footer
      %s26 = sadd.s32 1, %s22
    $region7: #{tcn_attention_forward.1} parent=1 // loop_footer_branch
      %21 = sbr.rel target = $region3
    $region8: #{tcn_attention_forward.1} parent=1 // loop_exit
      _
    %1235 = vsyncpa [#allocation3], 1
    %s1236 = scalar_lea.sflag [#allocation3], 1
    %1237 = vsyncpa %s1236, 1

</llo_original>
